<compile_context>
chip_gen: v5e
topology: v5e:2x2
jax: 0.10.0
libtpu: 0.0.40
codegen_flags: <defaults>
</compile_context>

<pallas_src>
import functools

import jax
import jax.numpy as jnp
from jax import lax
from jax.experimental import pallas as pl
from jax.experimental.pallas import tpu as pltpu


def _grad_loss_kernel(pred_ref, targ_ref, mask_ref, out_ref, *, scales: int):
    """One batch-tile; emits per-scale partial sums into a lane-dense block.

    out_ref block is (1, 8, 128):
      [0, 0, s] = sum over this tile of masked |gradient| at scale s
      [0, 1, s] = sum over this tile of the downsampled mask at scale s
    """
    pred = pred_ref[...].astype(jnp.float32)   # (TB, H, W)
    targ = targ_ref[...].astype(jnp.float32)
    mask = mask_ref[...].astype(jnp.float32)
    _, H, W = pred.shape

    diff = mask * (pred - targ)

    # Full-res coordinate grids (H -> sublanes, W -> lanes).
    row = lax.broadcasted_iota(jnp.int32, diff.shape, 1)
    col = lax.broadcasted_iota(jnp.int32, diff.shape, 2)

    # Lane-dense output tile, filled with one-hot selects per scale.
    orow = lax.broadcasted_iota(jnp.int32, (8, 128), 0)
    ocol = lax.broadcasted_iota(jnp.int32, (8, 128), 1)
    out = jnp.zeros((8, 128), jnp.float32)

    for s in range(scales):
        step = 1 << s
        if step == 1:
            rc = None                                   # every position is on-grid
        else:
            rg = (row & (step - 1)) == 0                # i % step == 0
            cg = (col & (step - 1)) == 0                # j % step == 0
            rc = rg & cg

        gsum = jnp.float32(0.0)

        # x-gradient: pairs (j, j+step) along W, evaluated at on-grid (i, j).
        if W > step:
            gx = jnp.abs(diff[:, :, step:] - diff[:, :, :-step]) \
                * (mask[:, :, step:] * mask[:, :, :-step])
            if rc is not None:
                gx = jnp.where(rc[:, :, :-step], gx, 0.0)
            gsum = gsum + jnp.sum(gx)

        # y-gradient: pairs (i, i+step) along H, evaluated at on-grid (i, j).
        if H > step:
            gy = jnp.abs(diff[:, step:, :] - diff[:, :-step, :]) \
                * (mask[:, step:, :] * mask[:, :-step, :])
            if rc is not None:
                gy = jnp.where(rc[:, :-step, :], gy, 0.0)
            gsum = gsum + jnp.sum(gy)

        # Downsampled-mask sum at this scale.
        if rc is None:
            msum = jnp.sum(mask)
        else:
            msum = jnp.sum(jnp.where(rc, mask, 0.0))

        out = out + jnp.where((orow == 0) & (ocol == s), gsum, 0.0)
        out = out + jnp.where((orow == 1) & (ocol == s), msum, 0.0)

    out_ref[0] = out


def gradient_loss_forward(prediction, target, mask, scales=4):
    """Forward pass of GradientLoss (reduction='batch-based')."""
    if prediction.ndim == 3:
        prediction = prediction[:, None]
    if target.ndim == 3:
        target = target[:, None]
    if mask.ndim == 3:
        mask = mask[:, None]
    assert mask.ndim == 4
    assert mask.shape[-2:] == prediction.shape[-2:] == target.shape[-2:]
    assert 1 <= scales <= 128

    N, C, H, W = prediction.shape
    B = N * C
    pred3 = prediction.reshape(B, H, W)
    targ3 = target.reshape(B, H, W)
    mask3 = mask.reshape(B, H, W)

    # Batch tile: keep each input block around <=512 KiB so
    # 3 inputs x 2 pipeline buffers stays far under the v7x 64 MiB VMEM budget
    # (and is trivially fine on v5e/v6e).
    target_block_bytes = 512 * 1024
    tb = max(1, min(B, target_block_bytes // max(1, H * W * 4)))
    num_blocks = pl.cdiv(B, tb)
    b_padded = num_blocks * tb
    if b_padded != B:
        # Zero padding contributes nothing: mask==0 => grad==0 and msum==0.
        pad = ((0, b_padded - B), (0, 0), (0, 0))
        pred3 = jnp.pad(pred3, pad)
        targ3 = jnp.pad(targ3, pad)
        mask3 = jnp.pad(mask3, pad)

    partials = pl.pallas_call(
        functools.partial(_grad_loss_kernel, scales=scales),
        out_shape=jax.ShapeDtypeStruct((num_blocks, 8, 128), jnp.float32),
        grid_spec=pltpu.PrefetchScalarGridSpec(
            num_scalar_prefetch=0,
            grid=(num_blocks,),
            in_specs=[
                pl.BlockSpec((tb, H, W), lambda b: (b, 0, 0)),
                pl.BlockSpec((tb, H, W), lambda b: (b, 0, 0)),
                pl.BlockSpec((tb, H, W), lambda b: (b, 0, 0)),
            ],
            out_specs=pl.BlockSpec((1, 8, 128), lambda b: (b, 0, 0)),
        ),
        compiler_params=pltpu.CompilerParams(
            dimension_semantics=("parallel",)),
    )(pred3, targ3, mask3)

    # Tiny final reduction in plain JAX.
    gsum = jnp.sum(partials[:, 0, :scales], axis=0)          # (scales,)
    msum = jnp.sum(partials[:, 1, :scales], axis=0)          # (scales,)
    image_loss = gsum / jnp.float32(B)                       # mean over (N, C)
    safe_div = image_loss / jnp.where(msum == 0, 1.0, msum)
    per_scale = jnp.where(msum == 0, 0.0, safe_div)          # batch-based reduction
    return jnp.sum(per_scale)


if __name__ == "__main__":
    key = jax.random.PRNGKey(0)
    k1, k2, k3 = jax.random.split(key, 3)
    N, C, H, W = 2, 4, 16, 16
    prediction = jax.random.normal(k1, (N, C, H, W), jnp.float32)
    target = jax.random.normal(k2, (N, C, H, W), jnp.float32)
    mask = (jax.random.uniform(k3, (N, C, H, W)) > 0.3).astype(jnp.float32)

    loss_fn = jax.jit(functools.partial(gradient_loss_forward, scales=4))
    out = jax.block_until_ready(loss_fn(prediction, target, mask))

    # Plain-JAX reference mirroring the PyTorch math (spec includes the
    # torch.mean(image_loss) before reduction_batch_based).
    def _ref_scale(p, t, m):
        B = p.shape[0] * p.shape[1]
        diff = m * (p - t)
        gx = jnp.abs(diff[:, :, :, 1:] - diff[:, :, :, :-1]) \
            * m[:, :, :, 1:] * m[:, :, :, :-1]
        gy = jnp.abs(diff[:, :, 1:, :] - diff[:, :, :-1, :]) \
            * m[:, :, 1:, :] * m[:, :, :-1, :]
        il = jnp.mean(jnp.sum(gx, (2, 3)) + jnp.sum(gy, (2, 3)))
        Msum = jnp.sum(m)
        return jnp.where(Msum == 0, 0.0, il / Msum)

    ref = sum(
        _ref_scale(prediction[:, :, ::2**s, ::2**s],
                   target[:, :, ::2**s, ::2**s],
                   mask[:, :, ::2**s, ::2**s])
        for s in range(4))

    assert jnp.allclose(out, ref, rtol=1e-4, atol=1e-6), (out, ref)
    print("KERNEL_OK")
</pallas_src>

<mosaic_0001>
module attributes {stable_mosaic.version = 11 : i64} {
  func.func @_grad_loss_kernel(%arg0: i32, %arg1: memref<8x16x16xf32, #tpu.memory_space<vmem>>, %arg2: memref<8x16x16xf32, #tpu.memory_space<vmem>>, %arg3: memref<8x16x16xf32, #tpu.memory_space<vmem>>, %arg4: memref<1x8x128xf32, #tpu.memory_space<vmem>>) attributes {dimension_semantics = [#tpu.dimension_semantics<parallel>], iteration_bounds = array<i64: 1>, scalar_prefetch = 0 : i64, scratch_operands = 0 : i64, tpu.core_type = #tpu.core_type<tc>, window_params = [{transform_indices = @transform_0, window_bounds = array<i64: 8, 16, 16>}, {transform_indices = @transform_1, window_bounds = array<i64: 8, 16, 16>}, {transform_indices = @transform_2, window_bounds = array<i64: 8, 16, 16>}, {transform_indices = @transform_3, window_bounds = array<i64: 1, 8, 128>}]} {
    %c0 = arith.constant 0 : index
    %c0_0 = arith.constant 0 : index
    %c0_1 = arith.constant 0 : index
    %0 = vector.load %arg1[%c0, %c0_0, %c0_1] : memref<8x16x16xf32, #tpu.memory_space<vmem>>, vector<8x16x16xf32>
    %c0_2 = arith.constant 0 : index
    %c0_3 = arith.constant 0 : index
    %c0_4 = arith.constant 0 : index
    %1 = vector.load %arg2[%c0_2, %c0_3, %c0_4] : memref<8x16x16xf32, #tpu.memory_space<vmem>>, vector<8x16x16xf32>
    %c0_5 = arith.constant 0 : index
    %c0_6 = arith.constant 0 : index
    %c0_7 = arith.constant 0 : index
    %2 = vector.load %arg3[%c0_5, %c0_6, %c0_7] : memref<8x16x16xf32, #tpu.memory_space<vmem>>, vector<8x16x16xf32>
    %3 = arith.subf %0, %1 : vector<8x16x16xf32>
    %4 = arith.mulf %2, %3 : vector<8x16x16xf32>
    %5 = tpu.iota {dimensions = array<i32: 1>} : vector<8x16x16xi32>
    %6 = tpu.iota {dimensions = array<i32: 2>} : vector<8x16x16xi32>
    %7 = tpu.iota {dimensions = array<i32: 0>} : vector<8x128xi32>
    %8 = tpu.iota {dimensions = array<i32: 1>} : vector<8x128xi32>
    %cst = arith.constant 0.000000e+00 : f32
    %9 = vector.broadcast %cst : f32 to vector<8x128xf32>
    %10 = vector.extract_strided_slice %4 {offsets = [0, 0, 1], sizes = [8, 16, 15], strides = [1, 1, 1]} : vector<8x16x16xf32> to vector<8x16x15xf32>
    %11 = vector.extract_strided_slice %4 {offsets = [0, 0, 0], sizes = [8, 16, 15], strides = [1, 1, 1]} : vector<8x16x16xf32> to vector<8x16x15xf32>
    %12 = arith.subf %10, %11 : vector<8x16x15xf32>
    %13 = math.absf %12 : vector<8x16x15xf32>
    %14 = vector.extract_strided_slice %2 {offsets = [0, 0, 1], sizes = [8, 16, 15], strides = [1, 1, 1]} : vector<8x16x16xf32> to vector<8x16x15xf32>
    %15 = vector.extract_strided_slice %2 {offsets = [0, 0, 0], sizes = [8, 16, 15], strides = [1, 1, 1]} : vector<8x16x16xf32> to vector<8x16x15xf32>
    %16 = arith.mulf %14, %15 : vector<8x16x15xf32>
    %17 = arith.mulf %13, %16 : vector<8x16x15xf32>
    %18 = vector.shape_cast %17 : vector<8x16x15xf32> to vector<1x8x16x15xf32>
    %cst_8 = arith.constant dense<0.000000e+00> : vector<1xf32>
    %19 = vector.multi_reduction <add>, %18, %cst_8 [1, 2, 3] : vector<1x8x16x15xf32> to vector<1xf32>
    %20 = vector.shape_cast %19 : vector<1xf32> to vector<1x1x1x1xf32>
    %21 = vector.extract %20[0, 0, 0, 0] : f32 from vector<1x1x1x1xf32>
    %cst_9 = arith.constant 0.000000e+00 : f32
    %22 = arith.addf %cst_9, %21 : f32
    %23 = vector.extract_strided_slice %4 {offsets = [0, 1, 0], sizes = [8, 15, 16], strides = [1, 1, 1]} : vector<8x16x16xf32> to vector<8x15x16xf32>
    %24 = vector.extract_strided_slice %4 {offsets = [0, 0, 0], sizes = [8, 15, 16], strides = [1, 1, 1]} : vector<8x16x16xf32> to vector<8x15x16xf32>
    %25 = arith.subf %23, %24 : vector<8x15x16xf32>
    %26 = math.absf %25 : vector<8x15x16xf32>
    %27 = vector.extract_strided_slice %2 {offsets = [0, 1, 0], sizes = [8, 15, 16], strides = [1, 1, 1]} : vector<8x16x16xf32> to vector<8x15x16xf32>
    %28 = vector.extract_strided_slice %2 {offsets = [0, 0, 0], sizes = [8, 15, 16], strides = [1, 1, 1]} : vector<8x16x16xf32> to vector<8x15x16xf32>
    %29 = arith.mulf %27, %28 : vector<8x15x16xf32>
    %30 = arith.mulf %26, %29 : vector<8x15x16xf32>
    %31 = vector.shape_cast %30 : vector<8x15x16xf32> to vector<1x8x15x16xf32>
    %cst_10 = arith.constant dense<0.000000e+00> : vector<1xf32>
    %32 = vector.multi_reduction <add>, %31, %cst_10 [1, 2, 3] : vector<1x8x15x16xf32> to vector<1xf32>
    %33 = vector.shape_cast %32 : vector<1xf32> to vector<1x1x1x1xf32>
    %34 = vector.extract %33[0, 0, 0, 0] : f32 from vector<1x1x1x1xf32>
    %35 = arith.addf %22, %34 : f32
    %36 = vector.shape_cast %2 : vector<8x16x16xf32> to vector<1x8x16x16xf32>
    %cst_11 = arith.constant dense<0.000000e+00> : vector<1xf32>
    %37 = vector.multi_reduction <add>, %36, %cst_11 [1, 2, 3] : vector<1x8x16x16xf32> to vector<1xf32>
    %38 = vector.shape_cast %37 : vector<1xf32> to vector<1x1x1x1xf32>
    %39 = vector.extract %38[0, 0, 0, 0] : f32 from vector<1x1x1x1xf32>
    %c0_i32 = arith.constant 0 : i32
    %40 = vector.broadcast %c0_i32 : i32 to vector<8x128xi32>
    %41 = arith.cmpi eq, %7, %40 : vector<8x128xi32>
    %c0_i32_12 = arith.constant 0 : i32
    %42 = vector.broadcast %c0_i32_12 : i32 to vector<8x128xi32>
    %43 = arith.cmpi eq, %8, %42 : vector<8x128xi32>
    %44 = arith.andi %41, %43 : vector<8x128xi1>
    %cst_13 = arith.constant 0.000000e+00 : f32
    %45 = vector.broadcast %35 : f32 to vector<8x128xf32>
    %46 = vector.broadcast %cst_13 : f32 to vector<8x128xf32>
    %47 = arith.select %44, %45, %46 : vector<8x128xi1>, vector<8x128xf32>
    %48 = arith.addf %9, %47 : vector<8x128xf32>
    %c1_i32 = arith.constant 1 : i32
    %49 = vector.broadcast %c1_i32 : i32 to vector<8x128xi32>
    %50 = arith.cmpi eq, %7, %49 : vector<8x128xi32>
    %c0_i32_14 = arith.constant 0 : i32
    %51 = vector.broadcast %c0_i32_14 : i32 to vector<8x128xi32>
    %52 = arith.cmpi eq, %8, %51 : vector<8x128xi32>
    %53 = arith.andi %50, %52 : vector<8x128xi1>
    %cst_15 = arith.constant 0.000000e+00 : f32
    %54 = vector.broadcast %39 : f32 to vector<8x128xf32>
    %55 = vector.broadcast %cst_15 : f32 to vector<8x128xf32>
    %56 = arith.select %53, %54, %55 : vector<8x128xi1>, vector<8x128xf32>
    %57 = arith.addf %48, %56 : vector<8x128xf32>
    %c1_i32_16 = arith.constant 1 : i32
    %58 = vector.broadcast %c1_i32_16 : i32 to vector<8x16x16xi32>
    %59 = arith.andi %5, %58 : vector<8x16x16xi32>
    %c0_i32_17 = arith.constant 0 : i32
    %60 = vector.broadcast %c0_i32_17 : i32 to vector<8x16x16xi32>
    %61 = arith.cmpi eq, %59, %60 : vector<8x16x16xi32>
    %c1_i32_18 = arith.constant 1 : i32
    %62 = vector.broadcast %c1_i32_18 : i32 to vector<8x16x16xi32>
    %63 = arith.andi %6, %62 : vector<8x16x16xi32>
    %c0_i32_19 = arith.constant 0 : i32
    %64 = vector.broadcast %c0_i32_19 : i32 to vector<8x16x16xi32>
    %65 = arith.cmpi eq, %63, %64 : vector<8x16x16xi32>
    %66 = arith.andi %61, %65 : vector<8x16x16xi1>
    %67 = vector.extract_strided_slice %4 {offsets = [0, 0, 2], sizes = [8, 16, 14], strides = [1, 1, 1]} : vector<8x16x16xf32> to vector<8x16x14xf32>
    %68 = vector.extract_strided_slice %4 {offsets = [0, 0, 0], sizes = [8, 16, 14], strides = [1, 1, 1]} : vector<8x16x16xf32> to vector<8x16x14xf32>
    %69 = arith.subf %67, %68 : vector<8x16x14xf32>
    %70 = math.absf %69 : vector<8x16x14xf32>
    %71 = vector.extract_strided_slice %2 {offsets = [0, 0, 2], sizes = [8, 16, 14], strides = [1, 1, 1]} : vector<8x16x16xf32> to vector<8x16x14xf32>
    %72 = vector.extract_strided_slice %2 {offsets = [0, 0, 0], sizes = [8, 16, 14], strides = [1, 1, 1]} : vector<8x16x16xf32> to vector<8x16x14xf32>
    %73 = arith.mulf %71, %72 : vector<8x16x14xf32>
    %74 = arith.mulf %70, %73 : vector<8x16x14xf32>
    %75 = vector.extract_strided_slice %66 {offsets = [0, 0, 0], sizes = [8, 16, 14], strides = [1, 1, 1]} : vector<8x16x16xi1> to vector<8x16x14xi1>
    %cst_20 = arith.constant 0.000000e+00 : f32
    %76 = vector.broadcast %cst_20 : f32 to vector<8x16x14xf32>
    %77 = arith.select %75, %74, %76 : vector<8x16x14xi1>, vector<8x16x14xf32>
    %78 = vector.shape_cast %77 : vector<8x16x14xf32> to vector<1x8x16x14xf32>
    %cst_21 = arith.constant dense<0.000000e+00> : vector<1xf32>
    %79 = vector.multi_reduction <add>, %78, %cst_21 [1, 2, 3] : vector<1x8x16x14xf32> to vector<1xf32>
    %80 = vector.shape_cast %79 : vector<1xf32> to vector<1x1x1x1xf32>
    %81 = vector.extract %80[0, 0, 0, 0] : f32 from vector<1x1x1x1xf32>
    %cst_22 = arith.constant 0.000000e+00 : f32
    %82 = arith.addf %cst_22, %81 : f32
    %83 = vector.extract_strided_slice %4 {offsets = [0, 2, 0], sizes = [8, 14, 16], strides = [1, 1, 1]} : vector<8x16x16xf32> to vector<8x14x16xf32>
    %84 = vector.extract_strided_slice %4 {offsets = [0, 0, 0], sizes = [8, 14, 16], strides = [1, 1, 1]} : vector<8x16x16xf32> to vector<8x14x16xf32>
    %85 = arith.subf %83, %84 : vector<8x14x16xf32>
    %86 = math.absf %85 : vector<8x14x16xf32>
    %87 = vector.extract_strided_slice %2 {offsets = [0, 2, 0], sizes = [8, 14, 16], strides = [1, 1, 1]} : vector<8x16x16xf32> to vector<8x14x16xf32>
    %88 = vector.extract_strided_slice %2 {offsets = [0, 0, 0], sizes = [8, 14, 16], strides = [1, 1, 1]} : vector<8x16x16xf32> to vector<8x14x16xf32>
    %89 = arith.mulf %87, %88 : vector<8x14x16xf32>
    %90 = arith.mulf %86, %89 : vector<8x14x16xf32>
    %91 = vector.extract_strided_slice %66 {offsets = [0, 0, 0], sizes = [8, 14, 16], strides = [1, 1, 1]} : vector<8x16x16xi1> to vector<8x14x16xi1>
    %cst_23 = arith.constant 0.000000e+00 : f32
    %92 = vector.broadcast %cst_23 : f32 to vector<8x14x16xf32>
    %93 = arith.select %91, %90, %92 : vector<8x14x16xi1>, vector<8x14x16xf32>
    %94 = vector.shape_cast %93 : vector<8x14x16xf32> to vector<1x8x14x16xf32>
    %cst_24 = arith.constant dense<0.000000e+00> : vector<1xf32>
    %95 = vector.multi_reduction <add>, %94, %cst_24 [1, 2, 3] : vector<1x8x14x16xf32> to vector<1xf32>
    %96 = vector.shape_cast %95 : vector<1xf32> to vector<1x1x1x1xf32>
    %97 = vector.extract %96[0, 0, 0, 0] : f32 from vector<1x1x1x1xf32>
    %98 = arith.addf %82, %97 : f32
    %cst_25 = arith.constant 0.000000e+00 : f32
    %99 = vector.broadcast %cst_25 : f32 to vector<8x16x16xf32>
    %100 = arith.select %66, %2, %99 : vector<8x16x16xi1>, vector<8x16x16xf32>
    %101 = vector.shape_cast %100 : vector<8x16x16xf32> to vector<1x8x16x16xf32>
    %cst_26 = arith.constant dense<0.000000e+00> : vector<1xf32>
    %102 = vector.multi_reduction <add>, %101, %cst_26 [1, 2, 3] : vector<1x8x16x16xf32> to vector<1xf32>
    %103 = vector.shape_cast %102 : vector<1xf32> to vector<1x1x1x1xf32>
    %104 = vector.extract %103[0, 0, 0, 0] : f32 from vector<1x1x1x1xf32>
    %c0_i32_27 = arith.constant 0 : i32
    %105 = vector.broadcast %c0_i32_27 : i32 to vector<8x128xi32>
    %106 = arith.cmpi eq, %7, %105 : vector<8x128xi32>
    %c1_i32_28 = arith.constant 1 : i32
    %107 = vector.broadcast %c1_i32_28 : i32 to vector<8x128xi32>
    %108 = arith.cmpi eq, %8, %107 : vector<8x128xi32>
    %109 = arith.andi %106, %108 : vector<8x128xi1>
    %cst_29 = arith.constant 0.000000e+00 : f32
    %110 = vector.broadcast %98 : f32 to vector<8x128xf32>
    %111 = vector.broadcast %cst_29 : f32 to vector<8x128xf32>
    %112 = arith.select %109, %110, %111 : vector<8x128xi1>, vector<8x128xf32>
    %113 = arith.addf %57, %112 : vector<8x128xf32>
    %c1_i32_30 = arith.constant 1 : i32
    %114 = vector.broadcast %c1_i32_30 : i32 to vector<8x128xi32>
    %115 = arith.cmpi eq, %7, %114 : vector<8x128xi32>
    %c1_i32_31 = arith.constant 1 : i32
    %116 = vector.broadcast %c1_i32_31 : i32 to vector<8x128xi32>
    %117 = arith.cmpi eq, %8, %116 : vector<8x128xi32>
    %118 = arith.andi %115, %117 : vector<8x128xi1>
    %cst_32 = arith.constant 0.000000e+00 : f32
    %119 = vector.broadcast %104 : f32 to vector<8x128xf32>
    %120 = vector.broadcast %cst_32 : f32 to vector<8x128xf32>
    %121 = arith.select %118, %119, %120 : vector<8x128xi1>, vector<8x128xf32>
    %122 = arith.addf %113, %121 : vector<8x128xf32>
    %c3_i32 = arith.constant 3 : i32
    %123 = vector.broadcast %c3_i32 : i32 to vector<8x16x16xi32>
    %124 = arith.andi %5, %123 : vector<8x16x16xi32>
    %c0_i32_33 = arith.constant 0 : i32
    %125 = vector.broadcast %c0_i32_33 : i32 to vector<8x16x16xi32>
    %126 = arith.cmpi eq, %124, %125 : vector<8x16x16xi32>
    %c3_i32_34 = arith.constant 3 : i32
    %127 = vector.broadcast %c3_i32_34 : i32 to vector<8x16x16xi32>
    %128 = arith.andi %6, %127 : vector<8x16x16xi32>
    %c0_i32_35 = arith.constant 0 : i32
    %129 = vector.broadcast %c0_i32_35 : i32 to vector<8x16x16xi32>
    %130 = arith.cmpi eq, %128, %129 : vector<8x16x16xi32>
    %131 = arith.andi %126, %130 : vector<8x16x16xi1>
    %132 = vector.extract_strided_slice %4 {offsets = [0, 0, 4], sizes = [8, 16, 12], strides = [1, 1, 1]} : vector<8x16x16xf32> to vector<8x16x12xf32>
    %133 = vector.extract_strided_slice %4 {offsets = [0, 0, 0], sizes = [8, 16, 12], strides = [1, 1, 1]} : vector<8x16x16xf32> to vector<8x16x12xf32>
    %134 = arith.subf %132, %133 : vector<8x16x12xf32>
    %135 = math.absf %134 : vector<8x16x12xf32>
    %136 = vector.extract_strided_slice %2 {offsets = [0, 0, 4], sizes = [8, 16, 12], strides = [1, 1, 1]} : vector<8x16x16xf32> to vector<8x16x12xf32>
    %137 = vector.extract_strided_slice %2 {offsets = [0, 0, 0], sizes = [8, 16, 12], strides = [1, 1, 1]} : vector<8x16x16xf32> to vector<8x16x12xf32>
    %138 = arith.mulf %136, %137 : vector<8x16x12xf32>
    %139 = arith.mulf %135, %138 : vector<8x16x12xf32>
    %140 = vector.extract_strided_slice %131 {offsets = [0, 0, 0], sizes = [8, 16, 12], strides = [1, 1, 1]} : vector<8x16x16xi1> to vector<8x16x12xi1>
    %cst_36 = arith.constant 0.000000e+00 : f32
    %141 = vector.broadcast %cst_36 : f32 to vector<8x16x12xf32>
    %142 = arith.select %140, %139, %141 : vector<8x16x12xi1>, vector<8x16x12xf32>
    %143 = vector.shape_cast %142 : vector<8x16x12xf32> to vector<1x8x16x12xf32>
    %cst_37 = arith.constant dense<0.000000e+00> : vector<1xf32>
    %144 = vector.multi_reduction <add>, %143, %cst_37 [1, 2, 3] : vector<1x8x16x12xf32> to vector<1xf32>
    %145 = vector.shape_cast %144 : vector<1xf32> to vector<1x1x1x1xf32>
    %146 = vector.extract %145[0, 0, 0, 0] : f32 from vector<1x1x1x1xf32>
    %cst_38 = arith.constant 0.000000e+00 : f32
    %147 = arith.addf %cst_38, %146 : f32
    %148 = vector.extract_strided_slice %4 {offsets = [0, 4, 0], sizes = [8, 12, 16], strides = [1, 1, 1]} : vector<8x16x16xf32> to vector<8x12x16xf32>
    %149 = vector.extract_strided_slice %4 {offsets = [0, 0, 0], sizes = [8, 12, 16], strides = [1, 1, 1]} : vector<8x16x16xf32> to vector<8x12x16xf32>
    %150 = arith.subf %148, %149 : vector<8x12x16xf32>
    %151 = math.absf %150 : vector<8x12x16xf32>
    %152 = vector.extract_strided_slice %2 {offsets = [0, 4, 0], sizes = [8, 12, 16], strides = [1, 1, 1]} : vector<8x16x16xf32> to vector<8x12x16xf32>
    %153 = vector.extract_strided_slice %2 {offsets = [0, 0, 0], sizes = [8, 12, 16], strides = [1, 1, 1]} : vector<8x16x16xf32> to vector<8x12x16xf32>
    %154 = arith.mulf %152, %153 : vector<8x12x16xf32>
    %155 = arith.mulf %151, %154 : vector<8x12x16xf32>
    %156 = vector.extract_strided_slice %131 {offsets = [0, 0, 0], sizes = [8, 12, 16], strides = [1, 1, 1]} : vector<8x16x16xi1> to vector<8x12x16xi1>
    %cst_39 = arith.constant 0.000000e+00 : f32
    %157 = vector.broadcast %cst_39 : f32 to vector<8x12x16xf32>
    %158 = arith.select %156, %155, %157 : vector<8x12x16xi1>, vector<8x12x16xf32>
    %159 = vector.shape_cast %158 : vector<8x12x16xf32> to vector<1x8x12x16xf32>
    %cst_40 = arith.constant dense<0.000000e+00> : vector<1xf32>
    %160 = vector.multi_reduction <add>, %159, %cst_40 [1, 2, 3] : vector<1x8x12x16xf32> to vector<1xf32>
    %161 = vector.shape_cast %160 : vector<1xf32> to vector<1x1x1x1xf32>
    %162 = vector.extract %161[0, 0, 0, 0] : f32 from vector<1x1x1x1xf32>
    %163 = arith.addf %147, %162 : f32
    %cst_41 = arith.constant 0.000000e+00 : f32
    %164 = vector.broadcast %cst_41 : f32 to vector<8x16x16xf32>
    %165 = arith.select %131, %2, %164 : vector<8x16x16xi1>, vector<8x16x16xf32>
    %166 = vector.shape_cast %165 : vector<8x16x16xf32> to vector<1x8x16x16xf32>
    %cst_42 = arith.constant dense<0.000000e+00> : vector<1xf32>
    %167 = vector.multi_reduction <add>, %166, %cst_42 [1, 2, 3] : vector<1x8x16x16xf32> to vector<1xf32>
    %168 = vector.shape_cast %167 : vector<1xf32> to vector<1x1x1x1xf32>
    %169 = vector.extract %168[0, 0, 0, 0] : f32 from vector<1x1x1x1xf32>
    %c0_i32_43 = arith.constant 0 : i32
    %170 = vector.broadcast %c0_i32_43 : i32 to vector<8x128xi32>
    %171 = arith.cmpi eq, %7, %170 : vector<8x128xi32>
    %c2_i32 = arith.constant 2 : i32
    %172 = vector.broadcast %c2_i32 : i32 to vector<8x128xi32>
    %173 = arith.cmpi eq, %8, %172 : vector<8x128xi32>
    %174 = arith.andi %171, %173 : vector<8x128xi1>
    %cst_44 = arith.constant 0.000000e+00 : f32
    %175 = vector.broadcast %163 : f32 to vector<8x128xf32>
    %176 = vector.broadcast %cst_44 : f32 to vector<8x128xf32>
    %177 = arith.select %174, %175, %176 : vector<8x128xi1>, vector<8x128xf32>
    %178 = arith.addf %122, %177 : vector<8x128xf32>
    %c1_i32_45 = arith.constant 1 : i32
    %179 = vector.broadcast %c1_i32_45 : i32 to vector<8x128xi32>
    %180 = arith.cmpi eq, %7, %179 : vector<8x128xi32>
    %c2_i32_46 = arith.constant 2 : i32
    %181 = vector.broadcast %c2_i32_46 : i32 to vector<8x128xi32>
    %182 = arith.cmpi eq, %8, %181 : vector<8x128xi32>
    %183 = arith.andi %180, %182 : vector<8x128xi1>
    %cst_47 = arith.constant 0.000000e+00 : f32
    %184 = vector.broadcast %169 : f32 to vector<8x128xf32>
    %185 = vector.broadcast %cst_47 : f32 to vector<8x128xf32>
    %186 = arith.select %183, %184, %185 : vector<8x128xi1>, vector<8x128xf32>
    %187 = arith.addf %178, %186 : vector<8x128xf32>
    %c7_i32 = arith.constant 7 : i32
    %188 = vector.broadcast %c7_i32 : i32 to vector<8x16x16xi32>
    %189 = arith.andi %5, %188 : vector<8x16x16xi32>
    %c0_i32_48 = arith.constant 0 : i32
    %190 = vector.broadcast %c0_i32_48 : i32 to vector<8x16x16xi32>
    %191 = arith.cmpi eq, %189, %190 : vector<8x16x16xi32>
    %c7_i32_49 = arith.constant 7 : i32
    %192 = vector.broadcast %c7_i32_49 : i32 to vector<8x16x16xi32>
    %193 = arith.andi %6, %192 : vector<8x16x16xi32>
    %c0_i32_50 = arith.constant 0 : i32
    %194 = vector.broadcast %c0_i32_50 : i32 to vector<8x16x16xi32>
    %195 = arith.cmpi eq, %193, %194 : vector<8x16x16xi32>
    %196 = arith.andi %191, %195 : vector<8x16x16xi1>
    %197 = vector.extract_strided_slice %4 {offsets = [0, 0, 8], sizes = [8, 16, 8], strides = [1, 1, 1]} : vector<8x16x16xf32> to vector<8x16x8xf32>
    %198 = vector.extract_strided_slice %4 {offsets = [0, 0, 0], sizes = [8, 16, 8], strides = [1, 1, 1]} : vector<8x16x16xf32> to vector<8x16x8xf32>
    %199 = arith.subf %197, %198 : vector<8x16x8xf32>
    %200 = math.absf %199 : vector<8x16x8xf32>
    %201 = vector.extract_strided_slice %2 {offsets = [0, 0, 8], sizes = [8, 16, 8], strides = [1, 1, 1]} : vector<8x16x16xf32> to vector<8x16x8xf32>
    %202 = vector.extract_strided_slice %2 {offsets = [0, 0, 0], sizes = [8, 16, 8], strides = [1, 1, 1]} : vector<8x16x16xf32> to vector<8x16x8xf32>
    %203 = arith.mulf %201, %202 : vector<8x16x8xf32>
    %204 = arith.mulf %200, %203 : vector<8x16x8xf32>
    %205 = vector.extract_strided_slice %196 {offsets = [0, 0, 0], sizes = [8, 16, 8], strides = [1, 1, 1]} : vector<8x16x16xi1> to vector<8x16x8xi1>
    %cst_51 = arith.constant 0.000000e+00 : f32
    %206 = vector.broadcast %cst_51 : f32 to vector<8x16x8xf32>
    %207 = arith.select %205, %204, %206 : vector<8x16x8xi1>, vector<8x16x8xf32>
    %208 = vector.shape_cast %207 : vector<8x16x8xf32> to vector<1x8x16x8xf32>
    %cst_52 = arith.constant dense<0.000000e+00> : vector<1xf32>
    %209 = vector.multi_reduction <add>, %208, %cst_52 [1, 2, 3] : vector<1x8x16x8xf32> to vector<1xf32>
    %210 = vector.shape_cast %209 : vector<1xf32> to vector<1x1x1x1xf32>
    %211 = vector.extract %210[0, 0, 0, 0] : f32 from vector<1x1x1x1xf32>
    %cst_53 = arith.constant 0.000000e+00 : f32
    %212 = arith.addf %cst_53, %211 : f32
    %213 = vector.extract_strided_slice %4 {offsets = [0, 8, 0], sizes = [8, 8, 16], strides = [1, 1, 1]} : vector<8x16x16xf32> to vector<8x8x16xf32>
    %214 = vector.extract_strided_slice %4 {offsets = [0, 0, 0], sizes = [8, 8, 16], strides = [1, 1, 1]} : vector<8x16x16xf32> to vector<8x8x16xf32>
    %215 = arith.subf %213, %214 : vector<8x8x16xf32>
    %216 = math.absf %215 : vector<8x8x16xf32>
    %217 = vector.extract_strided_slice %2 {offsets = [0, 8, 0], sizes = [8, 8, 16], strides = [1, 1, 1]} : vector<8x16x16xf32> to vector<8x8x16xf32>
    %218 = vector.extract_strided_slice %2 {offsets = [0, 0, 0], sizes = [8, 8, 16], strides = [1, 1, 1]} : vector<8x16x16xf32> to vector<8x8x16xf32>
    %219 = arith.mulf %217, %218 : vector<8x8x16xf32>
    %220 = arith.mulf %216, %219 : vector<8x8x16xf32>
    %221 = vector.extract_strided_slice %196 {offsets = [0, 0, 0], sizes = [8, 8, 16], strides = [1, 1, 1]} : vector<8x16x16xi1> to vector<8x8x16xi1>
    %cst_54 = arith.constant 0.000000e+00 : f32
    %222 = vector.broadcast %cst_54 : f32 to vector<8x8x16xf32>
    %223 = arith.select %221, %220, %222 : vector<8x8x16xi1>, vector<8x8x16xf32>
    %224 = vector.shape_cast %223 : vector<8x8x16xf32> to vector<1x8x8x16xf32>
    %cst_55 = arith.constant dense<0.000000e+00> : vector<1xf32>
    %225 = vector.multi_reduction <add>, %224, %cst_55 [1, 2, 3] : vector<1x8x8x16xf32> to vector<1xf32>
    %226 = vector.shape_cast %225 : vector<1xf32> to vector<1x1x1x1xf32>
    %227 = vector.extract %226[0, 0, 0, 0] : f32 from vector<1x1x1x1xf32>
    %228 = arith.addf %212, %227 : f32
    %cst_56 = arith.constant 0.000000e+00 : f32
    %229 = vector.broadcast %cst_56 : f32 to vector<8x16x16xf32>
    %230 = arith.select %196, %2, %229 : vector<8x16x16xi1>, vector<8x16x16xf32>
    %231 = vector.shape_cast %230 : vector<8x16x16xf32> to vector<1x8x16x16xf32>
    %cst_57 = arith.constant dense<0.000000e+00> : vector<1xf32>
    %232 = vector.multi_reduction <add>, %231, %cst_57 [1, 2, 3] : vector<1x8x16x16xf32> to vector<1xf32>
    %233 = vector.shape_cast %232 : vector<1xf32> to vector<1x1x1x1xf32>
    %234 = vector.extract %233[0, 0, 0, 0] : f32 from vector<1x1x1x1xf32>
    %c0_i32_58 = arith.constant 0 : i32
    %235 = vector.broadcast %c0_i32_58 : i32 to vector<8x128xi32>
    %236 = arith.cmpi eq, %7, %235 : vector<8x128xi32>
    %c3_i32_59 = arith.constant 3 : i32
    %237 = vector.broadcast %c3_i32_59 : i32 to vector<8x128xi32>
    %238 = arith.cmpi eq, %8, %237 : vector<8x128xi32>
    %239 = arith.andi %236, %238 : vector<8x128xi1>
    %cst_60 = arith.constant 0.000000e+00 : f32
    %240 = vector.broadcast %228 : f32 to vector<8x128xf32>
    %241 = vector.broadcast %cst_60 : f32 to vector<8x128xf32>
    %242 = arith.select %239, %240, %241 : vector<8x128xi1>, vector<8x128xf32>
    %243 = arith.addf %187, %242 : vector<8x128xf32>
    %c1_i32_61 = arith.constant 1 : i32
    %244 = vector.broadcast %c1_i32_61 : i32 to vector<8x128xi32>
    %245 = arith.cmpi eq, %7, %244 : vector<8x128xi32>
    %c3_i32_62 = arith.constant 3 : i32
    %246 = vector.broadcast %c3_i32_62 : i32 to vector<8x128xi32>
    %247 = arith.cmpi eq, %8, %246 : vector<8x128xi32>
    %248 = arith.andi %245, %247 : vector<8x128xi1>
    %cst_63 = arith.constant 0.000000e+00 : f32
    %249 = vector.broadcast %234 : f32 to vector<8x128xf32>
    %250 = vector.broadcast %cst_63 : f32 to vector<8x128xf32>
    %251 = arith.select %248, %249, %250 : vector<8x128xi1>, vector<8x128xf32>
    %252 = arith.addf %243, %251 : vector<8x128xf32>
    %c0_64 = arith.constant 0 : index
    %c0_65 = arith.constant 0 : index
    %c0_66 = arith.constant 0 : index
    %253 = vector.load %arg4[%c0_64, %c0_65, %c0_66] : memref<1x8x128xf32, #tpu.memory_space<vmem>>, vector<1x8x128xf32>
    %254 = vector.shape_cast %253 : vector<1x8x128xf32> to vector<8x128xf32>
    %255 = vector.shape_cast %252 : vector<8x128xf32> to vector<1x8x128xf32>
    tpu.vector_store %arg4[%c0_64, %c0_65, %c0_66], %255 {strides = array<i32>} : memref<1x8x128xf32, #tpu.memory_space<vmem>>, vector<1x8x128xf32>,
    return
  }
  func.func @transform_0(%arg0: i32) -> (i32, i32, i32) {
    %c0_i32 = arith.constant 0 : i32
    %c0_i32_0 = arith.constant 0 : i32
    %c0_i32_1 = arith.constant 0 : i32
    return %arg0, %c0_i32, %c0_i32_0 : i32, i32, i32
  }
  func.func @transform_1(%arg0: i32) -> (i32, i32, i32) {
    %c0_i32 = arith.constant 0 : i32
    %c0_i32_0 = arith.constant 0 : i32
    %c0_i32_1 = arith.constant 0 : i32
    return %arg0, %c0_i32, %c0_i32_0 : i32, i32, i32
  }
  func.func @transform_2(%arg0: i32) -> (i32, i32, i32) {
    %c0_i32 = arith.constant 0 : i32
    %c0_i32_0 = arith.constant 0 : i32
    %c0_i32_1 = arith.constant 0 : i32
    return %arg0, %c0_i32, %c0_i32_0 : i32, i32, i32
  }
  func.func @transform_3(%arg0: i32) -> (i32, i32, i32) {
    %c0_i32 = arith.constant 0 : i32
    %c0_i32_0 = arith.constant 0 : i32
    %c0_i32_1 = arith.constant 0 : i32
    return %arg0, %c0_i32, %c0_i32_0 : i32, i32, i32
  }
}

</mosaic_0001>

<llo_original>
// kernel: gradient_loss_forward.1
$region0: #{gradient_loss_forward.1}
  #allocation0 [shape = 'u32[]', space=smem, size = 0x4, offset = 0x4, fixed_abs, tag = 'smem constant byte address 0x4 - core index']
  #allocation1 [shape = 'u32[72,128]{1,0:T(1,128)}', space=vmem, size = 0x9000, scoped, tag = 'internal scratch']
  %s0 = inlined_call_operand.hbm [shape: f32[8,16,16], index: 0, kind: input, shape index: {}]
  %s1 = inlined_call_operand.hbm [shape: f32[8,16,16], index: 1, kind: input, shape index: {}]
  %s2 = inlined_call_operand.hbm [shape: f32[8,16,16], index: 2, kind: input, shape index: {}]
  %s3 = inlined_call_operand.vmem [shape: f32[1,8,128], index: 3, kind: output, shape index: {}]
  %s4 = sld [smem:[#allocation0]]
  $region34: #{gradient_loss_forward.1} parent=0
    _
  %s6 = ssub.s32 1, %s4
  %s7 = scalar_select 0, %s6, %s4
  $region1: #{gradient_loss_forward.1} parent=0
    #allocation2 [shape = 'u8[65536]{0}', space=vmem, size = 0x10000, scoped, tag = 'input window, operand 0, single buffered']
    #allocation3 [shape = 's32[1]{0}', space=sflag, size = 0x4, scoped, tag = 'scoped memory for gradient_loss_forward.1']
    #allocation4 [shape = 'u8[65536]{0}', space=vmem, size = 0x10000, scoped, tag = 'input window, operand 1, single buffered']
    #allocation5 [shape = 's32[1]{0}', space=sflag, size = 0x4, scoped, tag = 'scoped memory for gradient_loss_forward.1']
    #allocation6 [shape = 'u8[65536]{0}', space=vmem, size = 0x10000, scoped, tag = 'input window, operand 2, single buffered']
    %8 = vsyncpa [#allocation3], 0
    %9 = vsyncpa [#allocation5], 0
    // Predicated region
    $region2: #{gradient_loss_forward.1} parent=1 // pred_check
      _
    $region3: #{gradient_loss_forward.1} parent=1 // pred_check_branch
      %11 = sbr.rel (0) target = $region5
    $region4: #{gradient_loss_forward.1} parent=1 // pred_region
      %13 = vsyncadd [#allocation3], 0
      %s14 = sshll.u32 %s0, 4
      %s15 = int_to_ptr.hbm [resolvable:$true] %s14
      %s16 = sshll.u32 [#allocation2], 4
      %s17 = int_to_ptr.vmem [resolvable:$true] %s16
      %22 = dma.hbm_to_vmem [thread:$0]  %s15, 2048, %s17, [#allocation3], 128, 128, 8
    $region5: #{gradient_loss_forward.1} parent=1 // pred_fallthru
      _
    // Predicated region
    $region6: #{gradient_loss_forward.1} parent=1 // pred_check
      _
    $region7: #{gradient_loss_forward.1} parent=1 // pred_check_branch
      %24 = sbr.rel (0) target = $region9
    $region8: #{gradient_loss_forward.1} parent=1 // pred_region
      %26 = vsyncadd [#allocation5], 0
      %s27 = sshll.u32 %s1, 4
      %s28 = int_to_ptr.hbm [resolvable:$true] %s27
      %s29 = sshll.u32 [#allocation4], 4
      %s30 = int_to_ptr.vmem [resolvable:$true] %s29
      %35 = dma.hbm_to_vmem [thread:$0]  %s28, 2048, %s30, [#allocation5], 128, 128, 8
    $region9: #{gradient_loss_forward.1} parent=1 // pred_fallthru
      _
    // Predicated region
    $region10: #{gradient_loss_forward.1} parent=1 // pred_check
      _
    $region11: #{gradient_loss_forward.1} parent=1 // pred_check_branch
      %37 = sbr.rel (0) target = $region13
    $region12: #{gradient_loss_forward.1} parent=1 // pred_region
      %39 = vsyncadd [#allocation5], 0
      %s40 = sshll.u32 %s2, 4
      %s41 = int_to_ptr.hbm [resolvable:$true] %s40
      %s42 = sshll.u32 [#allocation6], 4
      %s43 = int_to_ptr.vmem [resolvable:$true] %s42
      %48 = dma.hbm_to_vmem [thread:$0]  %s41, 2048, %s43, [#allocation5], 128, 128, 8
    $region13: #{gradient_loss_forward.1} parent=1 // pred_fallthru
      _
    // Predicated region
    $region14: #{gradient_loss_forward.1} parent=1 // pred_check
      _
    $region15: #{gradient_loss_forward.1} parent=1 // pred_check_branch
      %50 = sbr.rel (0) target = $region17
    $region16: #{gradient_loss_forward.1} parent=1 // pred_region
      %52 = dma.done [#allocation3], 2048
    $region17: #{gradient_loss_forward.1} parent=1 // pred_fallthru
      _
    // Predicated region
    $region18: #{gradient_loss_forward.1} parent=1 // pred_check
      _
    $region19: #{gradient_loss_forward.1} parent=1 // pred_check_branch
      %54 = sbr.rel (0) target = $region21
    $region20: #{gradient_loss_forward.1} parent=1 // pred_region
      %56 = dma.done [#allocation5], 2048
    $region21: #{gradient_loss_forward.1} parent=1 // pred_fallthru
      _
    // Predicated region
    $region22: #{gradient_loss_forward.1} parent=1 // pred_check
      _
    $region23: #{gradient_loss_forward.1} parent=1 // pred_check_branch
      %58 = sbr.rel (0) target = $region25
    $region24: #{gradient_loss_forward.1} parent=1 // pred_region
      %60 = dma.done [#allocation5], 2048
    $region25: #{gradient_loss_forward.1} parent=1 // pred_fallthru
      _
    %v61 = vld [vmem:[#allocation2] sm:$0xff]
    %v62 = vld [vmem:[#allocation2 + $0x8] sm:$0xff]
    %v63 = vld [vmem:[#allocation2 + $0x10] sm:$0xff]
    %v64 = vld [vmem:[#allocation2 + $0x18] sm:$0xff]
    %v65 = vld [vmem:[#allocation2 + $0x20] sm:$0xff]
    %v66 = vld [vmem:[#allocation2 + $0x28] sm:$0xff]
    %v67 = vld [vmem:[#allocation2 + $0x30] sm:$0xff]
    %v68 = vld [vmem:[#allocation2 + $0x38] sm:$0xff]
    %v69 = vld [vmem:[#allocation2 + $0x40] sm:$0xff]
    %v70 = vld [vmem:[#allocation2 + $0x48] sm:$0xff]
    %v71 = vld [vmem:[#allocation2 + $0x50] sm:$0xff]
    %v72 = vld [vmem:[#allocation2 + $0x58] sm:$0xff]
    %v73 = vld [vmem:[#allocation2 + $0x60] sm:$0xff]
    %v74 = vld [vmem:[#allocation2 + $0x68] sm:$0xff]
    %v75 = vld [vmem:[#allocation2 + $0x70] sm:$0xff]
    %v76 = vld [vmem:[#allocation2 + $0x78] sm:$0xff]
    %v77 = vld [vmem:[#allocation4] sm:$0xff]
    %v78 = vld [vmem:[#allocation4 + $0x8] sm:$0xff]
    %v79 = vld [vmem:[#allocation4 + $0x10] sm:$0xff]
    %v80 = vld [vmem:[#allocation4 + $0x18] sm:$0xff]
    %v81 = vld [vmem:[#allocation4 + $0x20] sm:$0xff]
    %v82 = vld [vmem:[#allocation4 + $0x28] sm:$0xff]
    %v83 = vld [vmem:[#allocation4 + $0x30] sm:$0xff]
    %v84 = vld [vmem:[#allocation4 + $0x38] sm:$0xff]
    %v85 = vld [vmem:[#allocation4 + $0x40] sm:$0xff]
    %v86 = vld [vmem:[#allocation4 + $0x48] sm:$0xff]
    %v87 = vld [vmem:[#allocation4 + $0x50] sm:$0xff]
    %v88 = vld [vmem:[#allocation4 + $0x58] sm:$0xff]
    %v89 = vld [vmem:[#allocation4 + $0x60] sm:$0xff]
    %v90 = vld [vmem:[#allocation4 + $0x68] sm:$0xff]
    %v91 = vld [vmem:[#allocation4 + $0x70] sm:$0xff]
    %v92 = vld [vmem:[#allocation4 + $0x78] sm:$0xff]
    %v93 = vld [vmem:[#allocation6] sm:$0xff]
    %v94 = vld [vmem:[#allocation6 + $0x8] sm:$0xff]
    %v95 = vld [vmem:[#allocation6 + $0x10] sm:$0xff]
    %v96 = vld [vmem:[#allocation6 + $0x18] sm:$0xff]
    %v97 = vld [vmem:[#allocation6 + $0x20] sm:$0xff]
    %v98 = vld [vmem:[#allocation6 + $0x28] sm:$0xff]
    %v99 = vld [vmem:[#allocation6 + $0x30] sm:$0xff]
    %v100 = vld [vmem:[#allocation6 + $0x38] sm:$0xff]
    %v101 = vld [vmem:[#allocation6 + $0x40] sm:$0xff]
    %v102 = vld [vmem:[#allocation6 + $0x48] sm:$0xff]
    %v103 = vld [vmem:[#allocation6 + $0x50] sm:$0xff]
    %v104 = vld [vmem:[#allocation6 + $0x58] sm:$0xff]
    %v105 = vld [vmem:[#allocation6 + $0x60] sm:$0xff]
    %v106 = vld [vmem:[#allocation6 + $0x68] sm:$0xff]
    %v107 = vld [vmem:[#allocation6 + $0x70] sm:$0xff]
    %v108 = vld [vmem:[#allocation6 + $0x78] sm:$0xff]
    %v109 = vsub.f32 %v61, %v77
    %v110 = vsub.f32 %v62, %v78
    %v111 = vsub.f32 %v63, %v79
    %v112 = vsub.f32 %v64, %v80
    %v113 = vsub.f32 %v65, %v81
    %v114 = vsub.f32 %v66, %v82
    %v115 = vsub.f32 %v67, %v83
    %v116 = vsub.f32 %v68, %v84
    %v117 = vsub.f32 %v69, %v85
    %v118 = vsub.f32 %v70, %v86
    %v119 = vsub.f32 %v71, %v87
    %v120 = vsub.f32 %v72, %v88
    %v121 = vsub.f32 %v73, %v89
    %v122 = vsub.f32 %v74, %v90
    %v123 = vsub.f32 %v75, %v91
    %v124 = vsub.f32 %v76, %v92
    %v125 = vmul.f32 %v93, %v109
    %v126 = vmul.f32 %v94, %v110
    %v127 = vmul.f32 %v95, %v111
    %v128 = vmul.f32 %v96, %v112
    %v129 = vmul.f32 %v97, %v113
    %v130 = vmul.f32 %v98, %v114
    %v131 = vmul.f32 %v99, %v115
    %v132 = vmul.f32 %v100, %v116
    %v133 = vmul.f32 %v101, %v117
    %v134 = vmul.f32 %v102, %v118
    %v135 = vmul.f32 %v103, %v119
    %v136 = vmul.f32 %v104, %v120
    %v137 = vmul.f32 %v105, %v121
    %v138 = vmul.f32 %v106, %v122
    %v139 = vmul.f32 %v107, %v123
    %v140 = vmul.f32 %v108, %v124
    %v141 = vlaneseq
    %v142 = vshrl.u32 %v141, 7
    %v143 = vadd.s32 %v142, 8
    %v144 = vlaneseq
    %v145 = vand.u32 %v144, 127
    %162 = vrot.lane.b32.xlu0 %v125, 1
    %v163 = vpop.permute.xlu0 %162
    %164 = vrot.lane.b32.xlu0 %v126, 1
    %v165 = vpop.permute.xlu0 %164
    %166 = vrot.lane.b32.xlu0 %v127, 1
    %v167 = vpop.permute.xlu0 %166
    %168 = vrot.lane.b32.xlu0 %v128, 1
    %v169 = vpop.permute.xlu0 %168
    %170 = vrot.lane.b32.xlu0 %v129, 1
    %v171 = vpop.permute.xlu0 %170
    %172 = vrot.lane.b32.xlu0 %v130, 1
    %v173 = vpop.permute.xlu0 %172
    %174 = vrot.lane.b32.xlu0 %v131, 1
    %v175 = vpop.permute.xlu0 %174
    %176 = vrot.lane.b32.xlu0 %v132, 1
    %v177 = vpop.permute.xlu0 %176
    %178 = vrot.lane.b32.xlu0 %v133, 1
    %v179 = vpop.permute.xlu0 %178
    %180 = vrot.lane.b32.xlu0 %v134, 1
    %v181 = vpop.permute.xlu0 %180
    %182 = vrot.lane.b32.xlu0 %v135, 1
    %v183 = vpop.permute.xlu0 %182
    %184 = vrot.lane.b32.xlu0 %v136, 1
    %v185 = vpop.permute.xlu0 %184
    %186 = vrot.lane.b32.xlu0 %v137, 1
    %v187 = vpop.permute.xlu0 %186
    %188 = vrot.lane.b32.xlu0 %v138, 1
    %v189 = vpop.permute.xlu0 %188
    %190 = vrot.lane.b32.xlu0 %v139, 1
    %v191 = vpop.permute.xlu0 %190
    %192 = vrot.lane.b32.xlu0 %v140, 1
    %v193 = vpop.permute.xlu0 %192
    %v210 = vsub.f32 %v125, %v163
    %v211 = vsub.f32 %v126, %v165
    %v212 = vsub.f32 %v127, %v167
    %v213 = vsub.f32 %v128, %v169
    %v214 = vsub.f32 %v129, %v171
    %v215 = vsub.f32 %v130, %v173
    %v216 = vsub.f32 %v131, %v175
    %v217 = vsub.f32 %v132, %v177
    %v218 = vsub.f32 %v133, %v179
    %v219 = vsub.f32 %v134, %v181
    %v220 = vsub.f32 %v135, %v183
    %v221 = vsub.f32 %v136, %v185
    %v222 = vsub.f32 %v137, %v187
    %v223 = vsub.f32 %v138, %v189
    %v224 = vsub.f32 %v139, %v191
    %v225 = vsub.f32 %v140, %v193
    %v226 = vand.u32 2147483647, %v210
    %v227 = vand.u32 2147483647, %v211
    %v228 = vand.u32 2147483647, %v212
    %v229 = vand.u32 2147483647, %v213
    %v230 = vand.u32 2147483647, %v214
    %v231 = vand.u32 2147483647, %v215
    %v232 = vand.u32 2147483647, %v216
    %v233 = vand.u32 2147483647, %v217
    %v234 = vand.u32 2147483647, %v218
    %v235 = vand.u32 2147483647, %v219
    %v236 = vand.u32 2147483647, %v220
    %v237 = vand.u32 2147483647, %v221
    %v238 = vand.u32 2147483647, %v222
    %v239 = vand.u32 2147483647, %v223
    %v240 = vand.u32 2147483647, %v224
    %v241 = vand.u32 2147483647, %v225
    %258 = vrot.lane.b32.xlu0 %v93, 1
    %v259 = vpop.permute.xlu0 %258
    %260 = vrot.lane.b32.xlu0 %v94, 1
    %v261 = vpop.permute.xlu0 %260
    %262 = vrot.lane.b32.xlu0 %v95, 1
    %v263 = vpop.permute.xlu0 %262
    %264 = vrot.lane.b32.xlu0 %v96, 1
    %v265 = vpop.permute.xlu0 %264
    %266 = vrot.lane.b32.xlu0 %v97, 1
    %v267 = vpop.permute.xlu0 %266
    %268 = vrot.lane.b32.xlu0 %v98, 1
    %v269 = vpop.permute.xlu0 %268
    %270 = vrot.lane.b32.xlu0 %v99, 1
    %v271 = vpop.permute.xlu0 %270
    %272 = vrot.lane.b32.xlu0 %v100, 1
    %v273 = vpop.permute.xlu0 %272
    %274 = vrot.lane.b32.xlu0 %v101, 1
    %v275 = vpop.permute.xlu0 %274
    %276 = vrot.lane.b32.xlu0 %v102, 1
    %v277 = vpop.permute.xlu0 %276
    %278 = vrot.lane.b32.xlu0 %v103, 1
    %v279 = vpop.permute.xlu0 %278
    %280 = vrot.lane.b32.xlu0 %v104, 1
    %v281 = vpop.permute.xlu0 %280
    %282 = vrot.lane.b32.xlu0 %v105, 1
    %v283 = vpop.permute.xlu0 %282
    %284 = vrot.lane.b32.xlu0 %v106, 1
    %v285 = vpop.permute.xlu0 %284
    %286 = vrot.lane.b32.xlu0 %v107, 1
    %v287 = vpop.permute.xlu0 %286
    %288 = vrot.lane.b32.xlu0 %v108, 1
    %v289 = vpop.permute.xlu0 %288
    %v306 = vmul.f32 %v93, %v259
    %v307 = vmul.f32 %v94, %v261
    %v308 = vmul.f32 %v95, %v263
    %v309 = vmul.f32 %v96, %v265
    %v310 = vmul.f32 %v97, %v267
    %v311 = vmul.f32 %v98, %v269
    %v312 = vmul.f32 %v99, %v271
    %v313 = vmul.f32 %v100, %v273
    %v314 = vmul.f32 %v101, %v275
    %v315 = vmul.f32 %v102, %v277
    %v316 = vmul.f32 %v103, %v279
    %v317 = vmul.f32 %v104, %v281
    %v318 = vmul.f32 %v105, %v283
    %v319 = vmul.f32 %v106, %v285
    %v320 = vmul.f32 %v107, %v287
    %v321 = vmul.f32 %v108, %v289
    %v322 = vmul.f32 %v226, %v306
    %v323 = vmul.f32 %v227, %v307
    %v324 = vmul.f32 %v228, %v308
    %v325 = vmul.f32 %v229, %v309
    %v326 = vmul.f32 %v230, %v310
    %v327 = vmul.f32 %v231, %v311
    %v328 = vmul.f32 %v232, %v312
    %v329 = vmul.f32 %v233, %v313
    %v330 = vmul.f32 %v234, %v314
    %v331 = vmul.f32 %v235, %v315
    %v332 = vmul.f32 %v236, %v316
    %v333 = vmul.f32 %v237, %v317
    %v334 = vmul.f32 %v238, %v318
    %v335 = vmul.f32 %v239, %v319
    %v336 = vmul.f32 %v240, %v320
    %v337 = vmul.f32 %v241, %v321
    %354 = vrot.lane.b32.xlu0 %v322, 127
    %v355 = vpop.permute.xlu0 %354
    %356 = vrot.lane.b32.xlu0 %v323, 127
    %v357 = vpop.permute.xlu0 %356
    %358 = vrot.lane.b32.xlu0 %v324, 127
    %v359 = vpop.permute.xlu0 %358
    %360 = vrot.lane.b32.xlu0 %v325, 127
    %v361 = vpop.permute.xlu0 %360
    %362 = vrot.lane.b32.xlu0 %v326, 127
    %v363 = vpop.permute.xlu0 %362
    %364 = vrot.lane.b32.xlu0 %v327, 127
    %v365 = vpop.permute.xlu0 %364
    %366 = vrot.lane.b32.xlu0 %v328, 127
    %v367 = vpop.permute.xlu0 %366
    %368 = vrot.lane.b32.xlu0 %v329, 127
    %v369 = vpop.permute.xlu0 %368
    %370 = vrot.lane.b32.xlu0 %v330, 127
    %v371 = vpop.permute.xlu0 %370
    %372 = vrot.lane.b32.xlu0 %v331, 127
    %v373 = vpop.permute.xlu0 %372
    %374 = vrot.lane.b32.xlu0 %v332, 127
    %v375 = vpop.permute.xlu0 %374
    %376 = vrot.lane.b32.xlu0 %v333, 127
    %v377 = vpop.permute.xlu0 %376
    %378 = vrot.lane.b32.xlu0 %v334, 127
    %v379 = vpop.permute.xlu0 %378
    %380 = vrot.lane.b32.xlu0 %v335, 127
    %v381 = vpop.permute.xlu0 %380
    %382 = vrot.lane.b32.xlu0 %v336, 127
    %v383 = vpop.permute.xlu0 %382
    %384 = vrot.lane.b32.xlu0 %v337, 127
    %v385 = vpop.permute.xlu0 %384
    %vm402 = vcmask 121856
    %v403 = vsel %vm402, %v355, 0.0
    %v404 = vsel %vm402, %v357, 0.0
    %v405 = vadd.f32 %v403, %v404
    %v406 = vsel %vm402, %v359, 0.0
    %v407 = vadd.f32 %v405, %v406
    %v408 = vsel %vm402, %v361, 0.0
    %v409 = vadd.f32 %v407, %v408
    %v410 = vsel %vm402, %v363, 0.0
    %v411 = vadd.f32 %v409, %v410
    %v412 = vsel %vm402, %v365, 0.0
    %v413 = vadd.f32 %v411, %v412
    %v414 = vsel %vm402, %v367, 0.0
    %v415 = vadd.f32 %v413, %v414
    %v416 = vsel %vm402, %v369, 0.0
    %v417 = vadd.f32 %v415, %v416
    %v418 = vsel %vm402, %v371, 0.0
    %v419 = vadd.f32 %v417, %v418
    %v420 = vsel %vm402, %v373, 0.0
    %v421 = vadd.f32 %v419, %v420
    %v422 = vsel %vm402, %v375, 0.0
    %v423 = vadd.f32 %v421, %v422
    %v424 = vsel %vm402, %v377, 0.0
    %v425 = vadd.f32 %v423, %v424
    %v426 = vsel %vm402, %v379, 0.0
    %v427 = vadd.f32 %v425, %v426
    %v428 = vsel %vm402, %v381, 0.0
    %v429 = vadd.f32 %v427, %v428
    %v430 = vsel %vm402, %v383, 0.0
    %v431 = vadd.f32 %v429, %v430
    %v432 = vsel %vm402, %v385, 0.0
    %v433 = vadd.f32 %v431, %v432
    %434 = vadd.xlane.f32.xlu0 %v433
    %v435 = vpop.xlane.xlu0 %434
    %v436 = vrot.slane %v435, 4
    %v437 = vadd.f32 %v435, %v436
    %v438 = vrot.slane %v437, 2
    %v439 = vadd.f32 %v437, %v438
    %v440 = vrot.slane %v439, 1
    %v441 = vadd.f32 %v439, %v440
    %s442 = vtos %v441
    %s443 = sadd.f32 %s442, 0.0
    %vm444 = vcmask 1040384
    %v445 = vrot.slane %v125, 7
    %v446 = vrot.slane %v126, 7
    %v447 = vsel %vm444, %v445, %v446
    %v448 = vrot.slane %v127, 7
    %v449 = vrot.slane %v128, 7
    %v450 = vsel %vm444, %v448, %v449
    %v451 = vrot.slane %v129, 7
    %v452 = vrot.slane %v130, 7
    %v453 = vsel %vm444, %v451, %v452
    %v454 = vrot.slane %v131, 7
    %v455 = vrot.slane %v132, 7
    %v456 = vsel %vm444, %v454, %v455
    %v457 = vrot.slane %v133, 7
    %v458 = vrot.slane %v134, 7
    %v459 = vsel %vm444, %v457, %v458
    %v460 = vrot.slane %v135, 7
    %v461 = vrot.slane %v136, 7
    %v462 = vsel %vm444, %v460, %v461
    %v463 = vrot.slane %v137, 7
    %v464 = vrot.slane %v138, 7
    %v465 = vsel %vm444, %v463, %v464
    %v466 = vrot.slane %v139, 7
    %v467 = vrot.slane %v140, 7
    %v468 = vsel %vm444, %v466, %v467
    %v485 = vsub.f32 %v125, %v445
    %v486 = vsub.f32 %v126, %v447
    %v487 = vsub.f32 %v127, %v448
    %v488 = vsub.f32 %v128, %v450
    %v489 = vsub.f32 %v129, %v451
    %v490 = vsub.f32 %v130, %v453
    %v491 = vsub.f32 %v131, %v454
    %v492 = vsub.f32 %v132, %v456
    %v493 = vsub.f32 %v133, %v457
    %v494 = vsub.f32 %v134, %v459
    %v495 = vsub.f32 %v135, %v460
    %v496 = vsub.f32 %v136, %v462
    %v497 = vsub.f32 %v137, %v463
    %v498 = vsub.f32 %v138, %v465
    %v499 = vsub.f32 %v139, %v466
    %v500 = vsub.f32 %v140, %v468
    %v501 = vand.u32 2147483647, %v485
    %v502 = vand.u32 2147483647, %v486
    %v503 = vand.u32 2147483647, %v487
    %v504 = vand.u32 2147483647, %v488
    %v505 = vand.u32 2147483647, %v489
    %v506 = vand.u32 2147483647, %v490
    %v507 = vand.u32 2147483647, %v491
    %v508 = vand.u32 2147483647, %v492
    %v509 = vand.u32 2147483647, %v493
    %v510 = vand.u32 2147483647, %v494
    %v511 = vand.u32 2147483647, %v495
    %v512 = vand.u32 2147483647, %v496
    %v513 = vand.u32 2147483647, %v497
    %v514 = vand.u32 2147483647, %v498
    %v515 = vand.u32 2147483647, %v499
    %v516 = vand.u32 2147483647, %v500
    %v517 = vrot.slane %v93, 7
    %v518 = vrot.slane %v94, 7
    %v519 = vsel %vm444, %v517, %v518
    %v520 = vrot.slane %v95, 7
    %v521 = vrot.slane %v96, 7
    %v522 = vsel %vm444, %v520, %v521
    %v523 = vrot.slane %v97, 7
    %v524 = vrot.slane %v98, 7
    %v525 = vsel %vm444, %v523, %v524
    %v526 = vrot.slane %v99, 7
    %v527 = vrot.slane %v100, 7
    %v528 = vsel %vm444, %v526, %v527
    %v529 = vrot.slane %v101, 7
    %v530 = vrot.slane %v102, 7
    %v531 = vsel %vm444, %v529, %v530
    %v532 = vrot.slane %v103, 7
    %v533 = vrot.slane %v104, 7
    %v534 = vsel %vm444, %v532, %v533
    %v535 = vrot.slane %v105, 7
    %v536 = vrot.slane %v106, 7
    %v537 = vsel %vm444, %v535, %v536
    %v538 = vrot.slane %v107, 7
    %v539 = vrot.slane %v108, 7
    %v540 = vsel %vm444, %v538, %v539
    %v557 = vmul.f32 %v93, %v517
    %v558 = vmul.f32 %v94, %v519
    %v559 = vmul.f32 %v95, %v520
    %v560 = vmul.f32 %v96, %v522
    %v561 = vmul.f32 %v97, %v523
    %v562 = vmul.f32 %v98, %v525
    %v563 = vmul.f32 %v99, %v526
    %v564 = vmul.f32 %v100, %v528
    %v565 = vmul.f32 %v101, %v529
    %v566 = vmul.f32 %v102, %v531
    %v567 = vmul.f32 %v103, %v532
    %v568 = vmul.f32 %v104, %v534
    %v569 = vmul.f32 %v105, %v535
    %v570 = vmul.f32 %v106, %v537
    %v571 = vmul.f32 %v107, %v538
    %v572 = vmul.f32 %v108, %v540
    %v573 = vmul.f32 %v501, %v557
    %v574 = vmul.f32 %v502, %v558
    %v575 = vmul.f32 %v503, %v559
    %v576 = vmul.f32 %v504, %v560
    %v577 = vmul.f32 %v505, %v561
    %v578 = vmul.f32 %v506, %v562
    %v579 = vmul.f32 %v507, %v563
    %v580 = vmul.f32 %v508, %v564
    %v581 = vmul.f32 %v509, %v565
    %v582 = vmul.f32 %v510, %v566
    %v583 = vmul.f32 %v511, %v567
    %v584 = vmul.f32 %v512, %v568
    %v585 = vmul.f32 %v513, %v569
    %v586 = vmul.f32 %v514, %v570
    %v587 = vmul.f32 %v515, %v571
    %v588 = vmul.f32 %v516, %v572
    %vm605 = vcmask 1046528
    %v606 = vrot.slane %v573, 1
    %v607 = vrot.slane %v574, 1
    %v608 = vsel %vm605, %v606, %v607
    %v609 = vrot.slane %v575, 1
    %v610 = vrot.slane %v576, 1
    %v611 = vsel %vm605, %v609, %v610
    %v612 = vrot.slane %v577, 1
    %v613 = vrot.slane %v578, 1
    %v614 = vsel %vm605, %v612, %v613
    %v615 = vrot.slane %v579, 1
    %v616 = vrot.slane %v580, 1
    %v617 = vsel %vm605, %v615, %v616
    %v618 = vrot.slane %v581, 1
    %v619 = vrot.slane %v582, 1
    %v620 = vsel %vm605, %v618, %v619
    %v621 = vrot.slane %v583, 1
    %v622 = vrot.slane %v584, 1
    %v623 = vsel %vm605, %v621, %v622
    %v624 = vrot.slane %v585, 1
    %v625 = vrot.slane %v586, 1
    %v626 = vsel %vm605, %v624, %v625
    %v627 = vrot.slane %v587, 1
    %v628 = vrot.slane %v588, 1
    %v629 = vsel %vm605, %v627, %v628
    %vm646 = vcmask 130048
    %v647 = vsel %vm646, %v608, 0.0
    %vm648 = vcmask 129024
    %v649 = vsel %vm648, %v607, 0.0
    %v650 = vadd.f32 %v647, %v649
    %v651 = vsel %vm646, %v611, 0.0
    %v652 = vadd.f32 %v650, %v651
    %v653 = vsel %vm648, %v610, 0.0
    %v654 = vadd.f32 %v652, %v653
    %v655 = vsel %vm646, %v614, 0.0
    %v656 = vadd.f32 %v654, %v655
    %v657 = vsel %vm648, %v613, 0.0
    %v658 = vadd.f32 %v656, %v657
    %v659 = vsel %vm646, %v617, 0.0
    %v660 = vadd.f32 %v658, %v659
    %v661 = vsel %vm648, %v616, 0.0
    %v662 = vadd.f32 %v660, %v661
    %v663 = vsel %vm646, %v620, 0.0
    %v664 = vadd.f32 %v662, %v663
    %v665 = vsel %vm648, %v619, 0.0
    %v666 = vadd.f32 %v664, %v665
    %v667 = vsel %vm646, %v623, 0.0
    %v668 = vadd.f32 %v666, %v667
    %v669 = vsel %vm648, %v622, 0.0
    %v670 = vadd.f32 %v668, %v669
    %v671 = vsel %vm646, %v626, 0.0
    %v672 = vadd.f32 %v670, %v671
    %v673 = vsel %vm648, %v625, 0.0
    %v674 = vadd.f32 %v672, %v673
    %v675 = vsel %vm646, %v629, 0.0
    %v676 = vadd.f32 %v674, %v675
    %v677 = vsel %vm648, %v628, 0.0
    %v678 = vadd.f32 %v676, %v677
    %679 = vadd.xlane.f32.xlu0 %v678
    %v680 = vpop.xlane.xlu0 %679
    %v681 = vrot.slane %v680, 4
    %v682 = vadd.f32 %v680, %v681
    %v683 = vrot.slane %v682, 2
    %v684 = vadd.f32 %v682, %v683
    %v685 = vrot.slane %v684, 1
    %v686 = vadd.f32 %v684, %v685
    %s687 = vtos %v686
    %s688 = sadd.f32 %s443, %s687
    %v689 = vsel %vm646, %v93, 0.0
    %v690 = vsel %vm646, %v94, 0.0
    %v691 = vadd.f32 %v689, %v690
    %v692 = vsel %vm646, %v95, 0.0
    %v693 = vadd.f32 %v691, %v692
    %v694 = vsel %vm646, %v96, 0.0
    %v695 = vadd.f32 %v693, %v694
    %v696 = vsel %vm646, %v97, 0.0
    %v697 = vadd.f32 %v695, %v696
    %v698 = vsel %vm646, %v98, 0.0
    %v699 = vadd.f32 %v697, %v698
    %v700 = vsel %vm646, %v99, 0.0
    %v701 = vadd.f32 %v699, %v700
    %v702 = vsel %vm646, %v100, 0.0
    %v703 = vadd.f32 %v701, %v702
    %v704 = vsel %vm646, %v101, 0.0
    %v705 = vadd.f32 %v703, %v704
    %v706 = vsel %vm646, %v102, 0.0
    %v707 = vadd.f32 %v705, %v706
    %v708 = vsel %vm646, %v103, 0.0
    %v709 = vadd.f32 %v707, %v708
    %v710 = vsel %vm646, %v104, 0.0
    %v711 = vadd.f32 %v709, %v710
    %v712 = vsel %vm646, %v105, 0.0
    %v713 = vadd.f32 %v711, %v712
    %v714 = vsel %vm646, %v106, 0.0
    %v715 = vadd.f32 %v713, %v714
    %v716 = vsel %vm646, %v107, 0.0
    %v717 = vadd.f32 %v715, %v716
    %v718 = vsel %vm646, %v108, 0.0
    %v719 = vadd.f32 %v717, %v718
    %720 = vadd.xlane.f32.xlu0 %v719
    %v721 = vpop.xlane.xlu0 %720
    %v722 = vrot.slane %v721, 4
    %v723 = vadd.f32 %v721, %v722
    %v724 = vrot.slane %v723, 2
    %v725 = vadd.f32 %v723, %v724
    %v726 = vrot.slane %v725, 1
    %v727 = vadd.f32 %v725, %v726
    %s728 = vtos %v727
    %vm729 = vcmp.eq.s32.totalorder %v142, 0
    %vm730 = vcmp.eq.s32.totalorder %v145, 0
    %vm731 = vmand %vm729, %vm730
    %v732 = vstv %s688
    %v733 = vsel %vm731, %v732, 0.0
    %v734 = vadd.f32 %v733, 0.0
    %vm735 = vcmp.eq.s32.totalorder %v142, 1
    %vm736 = vmand %vm735, %vm730
    %v737 = vstv %s728
    %v738 = vsel %vm736, %v737, 0.0
    %v739 = vadd.f32 %v734, %v738
    %v740 = vand.u32 %v142, 1
    %v741 = vand.u32 %v143, 1
    %vm742 = vcmp.eq.s32.totalorder %v740, 0
    %vm743 = vcmp.eq.s32.totalorder %v741, 0
    %v744 = vand.u32 %v145, 1
    %vm745 = vcmp.eq.s32.totalorder %v744, 0
    %vm746 = vmand %vm742, %vm745
    %vm747 = vmand %vm743, %vm745
    %748 = vrot.lane.b32.xlu0 %v125, 2
    %v749 = vpop.permute.xlu0 %748
    %750 = vrot.lane.b32.xlu0 %v126, 2
    %v751 = vpop.permute.xlu0 %750
    %752 = vrot.lane.b32.xlu0 %v127, 2
    %v753 = vpop.permute.xlu0 %752
    %754 = vrot.lane.b32.xlu0 %v128, 2
    %v755 = vpop.permute.xlu0 %754
    %756 = vrot.lane.b32.xlu0 %v129, 2
    %v757 = vpop.permute.xlu0 %756
    %758 = vrot.lane.b32.xlu0 %v130, 2
    %v759 = vpop.permute.xlu0 %758
    %760 = vrot.lane.b32.xlu0 %v131, 2
    %v761 = vpop.permute.xlu0 %760
    %762 = vrot.lane.b32.xlu0 %v132, 2
    %v763 = vpop.permute.xlu0 %762
    %764 = vrot.lane.b32.xlu0 %v133, 2
    %v765 = vpop.permute.xlu0 %764
    %766 = vrot.lane.b32.xlu0 %v134, 2
    %v767 = vpop.permute.xlu0 %766
    %768 = vrot.lane.b32.xlu0 %v135, 2
    %v769 = vpop.permute.xlu0 %768
    %770 = vrot.lane.b32.xlu0 %v136, 2
    %v771 = vpop.permute.xlu0 %770
    %772 = vrot.lane.b32.xlu0 %v137, 2
    %v773 = vpop.permute.xlu0 %772
    %774 = vrot.lane.b32.xlu0 %v138, 2
    %v775 = vpop.permute.xlu0 %774
    %776 = vrot.lane.b32.xlu0 %v139, 2
    %v777 = vpop.permute.xlu0 %776
    %778 = vrot.lane.b32.xlu0 %v140, 2
    %v779 = vpop.permute.xlu0 %778
    %v796 = vsub.f32 %v125, %v749
    %v797 = vsub.f32 %v126, %v751
    %v798 = vsub.f32 %v127, %v753
    %v799 = vsub.f32 %v128, %v755
    %v800 = vsub.f32 %v129, %v757
    %v801 = vsub.f32 %v130, %v759
    %v802 = vsub.f32 %v131, %v761
    %v803 = vsub.f32 %v132, %v763
    %v804 = vsub.f32 %v133, %v765
    %v805 = vsub.f32 %v134, %v767
    %v806 = vsub.f32 %v135, %v769
    %v807 = vsub.f32 %v136, %v771
    %v808 = vsub.f32 %v137, %v773
    %v809 = vsub.f32 %v138, %v775
    %v810 = vsub.f32 %v139, %v777
    %v811 = vsub.f32 %v140, %v779
    %v812 = vand.u32 2147483647, %v796
    %v813 = vand.u32 2147483647, %v797
    %v814 = vand.u32 2147483647, %v798
    %v815 = vand.u32 2147483647, %v799
    %v816 = vand.u32 2147483647, %v800
    %v817 = vand.u32 2147483647, %v801
    %v818 = vand.u32 2147483647, %v802
    %v819 = vand.u32 2147483647, %v803
    %v820 = vand.u32 2147483647, %v804
    %v821 = vand.u32 2147483647, %v805
    %v822 = vand.u32 2147483647, %v806
    %v823 = vand.u32 2147483647, %v807
    %v824 = vand.u32 2147483647, %v808
    %v825 = vand.u32 2147483647, %v809
    %v826 = vand.u32 2147483647, %v810
    %v827 = vand.u32 2147483647, %v811
    %828 = vrot.lane.b32.xlu0 %v93, 2
    %v829 = vpop.permute.xlu0 %828
    %830 = vrot.lane.b32.xlu0 %v94, 2
    %v831 = vpop.permute.xlu0 %830
    %832 = vrot.lane.b32.xlu0 %v95, 2
    %v833 = vpop.permute.xlu0 %832
    %834 = vrot.lane.b32.xlu0 %v96, 2
    %v835 = vpop.permute.xlu0 %834
    %836 = vrot.lane.b32.xlu0 %v97, 2
    %v837 = vpop.permute.xlu0 %836
    %838 = vrot.lane.b32.xlu0 %v98, 2
    %v839 = vpop.permute.xlu0 %838
    %840 = vrot.lane.b32.xlu0 %v99, 2
    %v841 = vpop.permute.xlu0 %840
    %842 = vrot.lane.b32.xlu0 %v100, 2
    %v843 = vpop.permute.xlu0 %842
    %844 = vrot.lane.b32.xlu0 %v101, 2
    %v845 = vpop.permute.xlu0 %844
    %846 = vrot.lane.b32.xlu0 %v102, 2
    %v847 = vpop.permute.xlu0 %846
    %848 = vrot.lane.b32.xlu0 %v103, 2
    %v849 = vpop.permute.xlu0 %848
    %850 = vrot.lane.b32.xlu0 %v104, 2
    %v851 = vpop.permute.xlu0 %850
    %852 = vrot.lane.b32.xlu0 %v105, 2
    %v853 = vpop.permute.xlu0 %852
    %854 = vrot.lane.b32.xlu0 %v106, 2
    %v855 = vpop.permute.xlu0 %854
    %856 = vrot.lane.b32.xlu0 %v107, 2
    %v857 = vpop.permute.xlu0 %856
    %858 = vrot.lane.b32.xlu0 %v108, 2
    %v859 = vpop.permute.xlu0 %858
    %v876 = vmul.f32 %v93, %v829
    %v877 = vmul.f32 %v94, %v831
    %v878 = vmul.f32 %v95, %v833
    %v879 = vmul.f32 %v96, %v835
    %v880 = vmul.f32 %v97, %v837
    %v881 = vmul.f32 %v98, %v839
    %v882 = vmul.f32 %v99, %v841
    %v883 = vmul.f32 %v100, %v843
    %v884 = vmul.f32 %v101, %v845
    %v885 = vmul.f32 %v102, %v847
    %v886 = vmul.f32 %v103, %v849
    %v887 = vmul.f32 %v104, %v851
    %v888 = vmul.f32 %v105, %v853
    %v889 = vmul.f32 %v106, %v855
    %v890 = vmul.f32 %v107, %v857
    %v891 = vmul.f32 %v108, %v859
    %v892 = vmul.f32 %v812, %v876
    %v893 = vmul.f32 %v813, %v877
    %v894 = vmul.f32 %v814, %v878
    %v895 = vmul.f32 %v815, %v879
    %v896 = vmul.f32 %v816, %v880
    %v897 = vmul.f32 %v817, %v881
    %v898 = vmul.f32 %v818, %v882
    %v899 = vmul.f32 %v819, %v883
    %v900 = vmul.f32 %v820, %v884
    %v901 = vmul.f32 %v821, %v885
    %v902 = vmul.f32 %v822, %v886
    %v903 = vmul.f32 %v823, %v887
    %v904 = vmul.f32 %v824, %v888
    %v905 = vmul.f32 %v825, %v889
    %v906 = vmul.f32 %v826, %v890
    %v907 = vmul.f32 %v827, %v891
    %924 = vrot.lane.b32.xlu0 %v892, 126
    %v925 = vpop.permute.xlu0 %924
    %926 = vrot.lane.b32.xlu0 %v893, 126
    %v927 = vpop.permute.xlu0 %926
    %928 = vrot.lane.b32.xlu0 %v894, 126
    %v929 = vpop.permute.xlu0 %928
    %930 = vrot.lane.b32.xlu0 %v895, 126
    %v931 = vpop.permute.xlu0 %930
    %932 = vrot.lane.b32.xlu0 %v896, 126
    %v933 = vpop.permute.xlu0 %932
    %934 = vrot.lane.b32.xlu0 %v897, 126
    %v935 = vpop.permute.xlu0 %934
    %936 = vrot.lane.b32.xlu0 %v898, 126
    %v937 = vpop.permute.xlu0 %936
    %938 = vrot.lane.b32.xlu0 %v899, 126
    %v939 = vpop.permute.xlu0 %938
    %940 = vrot.lane.b32.xlu0 %v900, 126
    %v941 = vpop.permute.xlu0 %940
    %942 = vrot.lane.b32.xlu0 %v901, 126
    %v943 = vpop.permute.xlu0 %942
    %944 = vrot.lane.b32.xlu0 %v902, 126
    %v945 = vpop.permute.xlu0 %944
    %946 = vrot.lane.b32.xlu0 %v903, 126
    %v947 = vpop.permute.xlu0 %946
    %948 = vrot.lane.b32.xlu0 %v904, 126
    %v949 = vpop.permute.xlu0 %948
    %950 = vrot.lane.b32.xlu0 %v905, 126
    %v951 = vpop.permute.xlu0 %950
    %952 = vrot.lane.b32.xlu0 %v906, 126
    %v953 = vpop.permute.xlu0 %952
    %954 = vrot.lane.b32.xlu0 %v907, 126
    %v955 = vpop.permute.xlu0 %954
    %v972 = vsel %vm746, %v925, 0.0
    %v973 = vsel %vm747, %v927, 0.0
    %v974 = vsel %vm746, %v929, 0.0
    %v975 = vsel %vm747, %v931, 0.0
    %v976 = vsel %vm746, %v933, 0.0
    %v977 = vsel %vm747, %v935, 0.0
    %v978 = vsel %vm746, %v937, 0.0
    %v979 = vsel %vm747, %v939, 0.0
    %v980 = vsel %vm746, %v941, 0.0
    %v981 = vsel %vm747, %v943, 0.0
    %v982 = vsel %vm746, %v945, 0.0
    %v983 = vsel %vm747, %v947, 0.0
    %v984 = vsel %vm746, %v949, 0.0
    %v985 = vsel %vm747, %v951, 0.0
    %v986 = vsel %vm746, %v953, 0.0
    %v987 = vsel %vm747, %v955, 0.0
    %vm988 = vcmask 113664
    %v989 = vsel %vm988, %v972, 0.0
    %v990 = vsel %vm988, %v973, 0.0
    %v991 = vadd.f32 %v989, %v990
    %v992 = vsel %vm988, %v974, 0.0
    %v993 = vadd.f32 %v991, %v992
    %v994 = vsel %vm988, %v975, 0.0
    %v995 = vadd.f32 %v993, %v994
    %v996 = vsel %vm988, %v976, 0.0
    %v997 = vadd.f32 %v995, %v996
    %v998 = vsel %vm988, %v977, 0.0
    %v999 = vadd.f32 %v997, %v998
    %v1000 = vsel %vm988, %v978, 0.0
    %v1001 = vadd.f32 %v999, %v1000
    %v1002 = vsel %vm988, %v979, 0.0
    %v1003 = vadd.f32 %v1001, %v1002
    %v1004 = vsel %vm988, %v980, 0.0
    %v1005 = vadd.f32 %v1003, %v1004
    %v1006 = vsel %vm988, %v981, 0.0
    %v1007 = vadd.f32 %v1005, %v1006
    %v1008 = vsel %vm988, %v982, 0.0
    %v1009 = vadd.f32 %v1007, %v1008
    %v1010 = vsel %vm988, %v983, 0.0
    %v1011 = vadd.f32 %v1009, %v1010
    %v1012 = vsel %vm988, %v984, 0.0
    %v1013 = vadd.f32 %v1011, %v1012
    %v1014 = vsel %vm988, %v985, 0.0
    %v1015 = vadd.f32 %v1013, %v1014
    %v1016 = vsel %vm988, %v986, 0.0
    %v1017 = vadd.f32 %v1015, %v1016
    %v1018 = vsel %vm988, %v987, 0.0
    %v1019 = vadd.f32 %v1017, %v1018
    %1020 = vadd.xlane.f32.xlu0 %v1019
    %v1021 = vpop.xlane.xlu0 %1020
    %v1022 = vrot.slane %v1021, 4
    %v1023 = vadd.f32 %v1021, %v1022
    %v1024 = vrot.slane %v1023, 2
    %v1025 = vadd.f32 %v1023, %v1024
    %v1026 = vrot.slane %v1025, 1
    %v1027 = vadd.f32 %v1025, %v1026
    %s1028 = vtos %v1027
    %s1029 = sadd.f32 %s1028, 0.0
    %vm1030 = vcmask 1041408
    %v1031 = vrot.slane %v125, 6
    %v1032 = vrot.slane %v126, 6
    %v1033 = vsel %vm1030, %v1031, %v1032
    %v1034 = vrot.slane %v127, 6
    %v1035 = vrot.slane %v128, 6
    %v1036 = vsel %vm1030, %v1034, %v1035
    %v1037 = vrot.slane %v129, 6
    %v1038 = vrot.slane %v130, 6
    %v1039 = vsel %vm1030, %v1037, %v1038
    %v1040 = vrot.slane %v131, 6
    %v1041 = vrot.slane %v132, 6
    %v1042 = vsel %vm1030, %v1040, %v1041
    %v1043 = vrot.slane %v133, 6
    %v1044 = vrot.slane %v134, 6
    %v1045 = vsel %vm1030, %v1043, %v1044
    %v1046 = vrot.slane %v135, 6
    %v1047 = vrot.slane %v136, 6
    %v1048 = vsel %vm1030, %v1046, %v1047
    %v1049 = vrot.slane %v137, 6
    %v1050 = vrot.slane %v138, 6
    %v1051 = vsel %vm1030, %v1049, %v1050
    %v1052 = vrot.slane %v139, 6
    %v1053 = vrot.slane %v140, 6
    %v1054 = vsel %vm1030, %v1052, %v1053
    %v1071 = vsub.f32 %v125, %v1031
    %v1072 = vsub.f32 %v126, %v1033
    %v1073 = vsub.f32 %v127, %v1034
    %v1074 = vsub.f32 %v128, %v1036
    %v1075 = vsub.f32 %v129, %v1037
    %v1076 = vsub.f32 %v130, %v1039
    %v1077 = vsub.f32 %v131, %v1040
    %v1078 = vsub.f32 %v132, %v1042
    %v1079 = vsub.f32 %v133, %v1043
    %v1080 = vsub.f32 %v134, %v1045
    %v1081 = vsub.f32 %v135, %v1046
    %v1082 = vsub.f32 %v136, %v1048
    %v1083 = vsub.f32 %v137, %v1049
    %v1084 = vsub.f32 %v138, %v1051
    %v1085 = vsub.f32 %v139, %v1052
    %v1086 = vsub.f32 %v140, %v1054
    %v1087 = vand.u32 2147483647, %v1071
    %v1088 = vand.u32 2147483647, %v1072
    %v1089 = vand.u32 2147483647, %v1073
    %v1090 = vand.u32 2147483647, %v1074
    %v1091 = vand.u32 2147483647, %v1075
    %v1092 = vand.u32 2147483647, %v1076
    %v1093 = vand.u32 2147483647, %v1077
    %v1094 = vand.u32 2147483647, %v1078
    %v1095 = vand.u32 2147483647, %v1079
    %v1096 = vand.u32 2147483647, %v1080
    %v1097 = vand.u32 2147483647, %v1081
    %v1098 = vand.u32 2147483647, %v1082
    %v1099 = vand.u32 2147483647, %v1083
    %v1100 = vand.u32 2147483647, %v1084
    %v1101 = vand.u32 2147483647, %v1085
    %v1102 = vand.u32 2147483647, %v1086
    %v1103 = vrot.slane %v93, 6
    %v1104 = vrot.slane %v94, 6
    %v1105 = vsel %vm1030, %v1103, %v1104
    %v1106 = vrot.slane %v95, 6
    %v1107 = vrot.slane %v96, 6
    %v1108 = vsel %vm1030, %v1106, %v1107
    %v1109 = vrot.slane %v97, 6
    %v1110 = vrot.slane %v98, 6
    %v1111 = vsel %vm1030, %v1109, %v1110
    %v1112 = vrot.slane %v99, 6
    %v1113 = vrot.slane %v100, 6
    %v1114 = vsel %vm1030, %v1112, %v1113
    %v1115 = vrot.slane %v101, 6
    %v1116 = vrot.slane %v102, 6
    %v1117 = vsel %vm1030, %v1115, %v1116
    %v1118 = vrot.slane %v103, 6
    %v1119 = vrot.slane %v104, 6
    %v1120 = vsel %vm1030, %v1118, %v1119
    %v1121 = vrot.slane %v105, 6
    %v1122 = vrot.slane %v106, 6
    %v1123 = vsel %vm1030, %v1121, %v1122
    %v1124 = vrot.slane %v107, 6
    %v1125 = vrot.slane %v108, 6
    %v1126 = vsel %vm1030, %v1124, %v1125
    %v1143 = vmul.f32 %v93, %v1103
    %v1144 = vmul.f32 %v94, %v1105
    %v1145 = vmul.f32 %v95, %v1106
    %v1146 = vmul.f32 %v96, %v1108
    %v1147 = vmul.f32 %v97, %v1109
    %v1148 = vmul.f32 %v98, %v1111
    %v1149 = vmul.f32 %v99, %v1112
    %v1150 = vmul.f32 %v100, %v1114
    %v1151 = vmul.f32 %v101, %v1115
    %v1152 = vmul.f32 %v102, %v1117
    %v1153 = vmul.f32 %v103, %v1118
    %v1154 = vmul.f32 %v104, %v1120
    %v1155 = vmul.f32 %v105, %v1121
    %v1156 = vmul.f32 %v106, %v1123
    %v1157 = vmul.f32 %v107, %v1124
    %v1158 = vmul.f32 %v108, %v1126
    %v1159 = vmul.f32 %v1087, %v1143
    %v1160 = vmul.f32 %v1088, %v1144
    %v1161 = vmul.f32 %v1089, %v1145
    %v1162 = vmul.f32 %v1090, %v1146
    %v1163 = vmul.f32 %v1091, %v1147
    %v1164 = vmul.f32 %v1092, %v1148
    %v1165 = vmul.f32 %v1093, %v1149
    %v1166 = vmul.f32 %v1094, %v1150
    %v1167 = vmul.f32 %v1095, %v1151
    %v1168 = vmul.f32 %v1096, %v1152
    %v1169 = vmul.f32 %v1097, %v1153
    %v1170 = vmul.f32 %v1098, %v1154
    %v1171 = vmul.f32 %v1099, %v1155
    %v1172 = vmul.f32 %v1100, %v1156
    %v1173 = vmul.f32 %v1101, %v1157
    %v1174 = vmul.f32 %v1102, %v1158
    %vm1191 = vcmask 1045504
    %v1192 = vrot.slane %v1159, 2
    %v1193 = vrot.slane %v1160, 2
    %v1194 = vsel %vm1191, %v1192, %v1193
    %v1195 = vrot.slane %v1161, 2
    %v1196 = vrot.slane %v1162, 2
    %v1197 = vsel %vm1191, %v1195, %v1196
    %v1198 = vrot.slane %v1163, 2
    %v1199 = vrot.slane %v1164, 2
    %v1200 = vsel %vm1191, %v1198, %v1199
    %v1201 = vrot.slane %v1165, 2
    %v1202 = vrot.slane %v1166, 2
    %v1203 = vsel %vm1191, %v1201, %v1202
    %v1204 = vrot.slane %v1167, 2
    %v1205 = vrot.slane %v1168, 2
    %v1206 = vsel %vm1191, %v1204, %v1205
    %v1207 = vrot.slane %v1169, 2
    %v1208 = vrot.slane %v1170, 2
    %v1209 = vsel %vm1191, %v1207, %v1208
    %v1210 = vrot.slane %v1171, 2
    %v1211 = vrot.slane %v1172, 2
    %v1212 = vsel %vm1191, %v1210, %v1211
    %v1213 = vrot.slane %v1173, 2
    %v1214 = vrot.slane %v1174, 2
    %v1215 = vsel %vm1191, %v1213, %v1214
    %v1232 = vsel %vm746, %v1194, 0.0
    %v1233 = vsel %vm747, %v1193, 0.0
    %v1234 = vsel %vm746, %v1197, 0.0
    %v1235 = vsel %vm747, %v1196, 0.0
    %v1236 = vsel %vm746, %v1200, 0.0
    %v1237 = vsel %vm747, %v1199, 0.0
    %v1238 = vsel %vm746, %v1203, 0.0
    %v1239 = vsel %vm747, %v1202, 0.0
    %v1240 = vsel %vm746, %v1206, 0.0
    %v1241 = vsel %vm747, %v1205, 0.0
    %v1242 = vsel %vm746, %v1209, 0.0
    %v1243 = vsel %vm747, %v1208, 0.0
    %v1244 = vsel %vm746, %v1212, 0.0
    %v1245 = vsel %vm747, %v1211, 0.0
    %v1246 = vsel %vm746, %v1215, 0.0
    %v1247 = vsel %vm747, %v1214, 0.0
    %v1248 = vsel %vm646, %v1232, 0.0
    %vm1249 = vcmask 128000
    %v1250 = vsel %vm1249, %v1233, 0.0
    %v1251 = vadd.f32 %v1248, %v1250
    %v1252 = vsel %vm646, %v1234, 0.0
    %v1253 = vadd.f32 %v1251, %v1252
    %v1254 = vsel %vm1249, %v1235, 0.0
    %v1255 = vadd.f32 %v1253, %v1254
    %v1256 = vsel %vm646, %v1236, 0.0
    %v1257 = vadd.f32 %v1255, %v1256
    %v1258 = vsel %vm1249, %v1237, 0.0
    %v1259 = vadd.f32 %v1257, %v1258
    %v1260 = vsel %vm646, %v1238, 0.0
    %v1261 = vadd.f32 %v1259, %v1260
    %v1262 = vsel %vm1249, %v1239, 0.0
    %v1263 = vadd.f32 %v1261, %v1262
    %v1264 = vsel %vm646, %v1240, 0.0
    %v1265 = vadd.f32 %v1263, %v1264
    %v1266 = vsel %vm1249, %v1241, 0.0
    %v1267 = vadd.f32 %v1265, %v1266
    %v1268 = vsel %vm646, %v1242, 0.0
    %v1269 = vadd.f32 %v1267, %v1268
    %v1270 = vsel %vm1249, %v1243, 0.0
    %v1271 = vadd.f32 %v1269, %v1270
    %v1272 = vsel %vm646, %v1244, 0.0
    %v1273 = vadd.f32 %v1271, %v1272
    %v1274 = vsel %vm1249, %v1245, 0.0
    %v1275 = vadd.f32 %v1273, %v1274
    %v1276 = vsel %vm646, %v1246, 0.0
    %v1277 = vadd.f32 %v1275, %v1276
    %v1278 = vsel %vm1249, %v1247, 0.0
    %v1279 = vadd.f32 %v1277, %v1278
    %1280 = vadd.xlane.f32.xlu0 %v1279
    %v1281 = vpop.xlane.xlu0 %1280
    %v1282 = vrot.slane %v1281, 4
    %v1283 = vadd.f32 %v1281, %v1282
    %v1284 = vrot.slane %v1283, 2
    %v1285 = vadd.f32 %v1283, %v1284
    %v1286 = vrot.slane %v1285, 1
    %v1287 = vadd.f32 %v1285, %v1286
    %s1288 = vtos %v1287
    %s1289 = sadd.f32 %s1029, %s1288
    %v1290 = vsel %vm746, %v93, 0.0
    %v1291 = vsel %vm747, %v94, 0.0
    %v1292 = vsel %vm746, %v95, 0.0
    %v1293 = vsel %vm747, %v96, 0.0
    %v1294 = vsel %vm746, %v97, 0.0
    %v1295 = vsel %vm747, %v98, 0.0
    %v1296 = vsel %vm746, %v99, 0.0
    %v1297 = vsel %vm747, %v100, 0.0
    %v1298 = vsel %vm746, %v101, 0.0
    %v1299 = vsel %vm747, %v102, 0.0
    %v1300 = vsel %vm746, %v103, 0.0
    %v1301 = vsel %vm747, %v104, 0.0
    %v1302 = vsel %vm746, %v105, 0.0
    %v1303 = vsel %vm747, %v106, 0.0
    %v1304 = vsel %vm746, %v107, 0.0
    %v1305 = vsel %vm747, %v108, 0.0
    %v1306 = vsel %vm646, %v1290, 0.0
    %v1307 = vsel %vm646, %v1291, 0.0
    %v1308 = vadd.f32 %v1306, %v1307
    %v1309 = vsel %vm646, %v1292, 0.0
    %v1310 = vadd.f32 %v1308, %v1309
    %v1311 = vsel %vm646, %v1293, 0.0
    %v1312 = vadd.f32 %v1310, %v1311
    %v1313 = vsel %vm646, %v1294, 0.0
    %v1314 = vadd.f32 %v1312, %v1313
    %v1315 = vsel %vm646, %v1295, 0.0
    %v1316 = vadd.f32 %v1314, %v1315
    %v1317 = vsel %vm646, %v1296, 0.0
    %v1318 = vadd.f32 %v1316, %v1317
    %v1319 = vsel %vm646, %v1297, 0.0
    %v1320 = vadd.f32 %v1318, %v1319
    %v1321 = vsel %vm646, %v1298, 0.0
    %v1322 = vadd.f32 %v1320, %v1321
    %v1323 = vsel %vm646, %v1299, 0.0
    %v1324 = vadd.f32 %v1322, %v1323
    %v1325 = vsel %vm646, %v1300, 0.0
    %v1326 = vadd.f32 %v1324, %v1325
    %v1327 = vsel %vm646, %v1301, 0.0
    %v1328 = vadd.f32 %v1326, %v1327
    %v1329 = vsel %vm646, %v1302, 0.0
    %v1330 = vadd.f32 %v1328, %v1329
    %v1331 = vsel %vm646, %v1303, 0.0
    %v1332 = vadd.f32 %v1330, %v1331
    %v1333 = vsel %vm646, %v1304, 0.0
    %v1334 = vadd.f32 %v1332, %v1333
    %v1335 = vsel %vm646, %v1305, 0.0
    %v1336 = vadd.f32 %v1334, %v1335
    %1337 = vadd.xlane.f32.xlu0 %v1336
    %v1338 = vpop.xlane.xlu0 %1337
    %v1339 = vrot.slane %v1338, 4
    %v1340 = vadd.f32 %v1338, %v1339
    %v1341 = vrot.slane %v1340, 2
    %v1342 = vadd.f32 %v1340, %v1341
    %v1343 = vrot.slane %v1342, 1
    %v1344 = vadd.f32 %v1342, %v1343
    %s1345 = vtos %v1344
    %vm1346 = vcmp.eq.s32.totalorder %v145, 1
    %vm1347 = vmand %vm729, %vm1346
    %v1348 = vstv %s1289
    %v1349 = vsel %vm1347, %v1348, 0.0
    %v1350 = vadd.f32 %v739, %v1349
    %vm1351 = vmand %vm735, %vm1346
    %v1352 = vstv %s1345
    %v1353 = vsel %vm1351, %v1352, 0.0
    %v1354 = vadd.f32 %v1350, %v1353
    %v1355 = vand.u32 %v142, 3
    %v1356 = vand.u32 %v143, 3
    %vm1357 = vcmp.eq.s32.totalorder %v1355, 0
    %vm1358 = vcmp.eq.s32.totalorder %v1356, 0
    %v1359 = vand.u32 %v145, 3
    %vm1360 = vcmp.eq.s32.totalorder %v1359, 0
    %vm1361 = vmand %vm1357, %vm1360
    %vm1362 = vmand %vm1358, %vm1360
    %1363 = vrot.lane.b32.xlu0 %v125, 4
    %v1364 = vpop.permute.xlu0 %1363
    %1365 = vrot.lane.b32.xlu0 %v126, 4
    %v1366 = vpop.permute.xlu0 %1365
    %1367 = vrot.lane.b32.xlu0 %v127, 4
    %v1368 = vpop.permute.xlu0 %1367
    %1369 = vrot.lane.b32.xlu0 %v128, 4
    %v1370 = vpop.permute.xlu0 %1369
    %1371 = vrot.lane.b32.xlu0 %v129, 4
    %v1372 = vpop.permute.xlu0 %1371
    %1373 = vrot.lane.b32.xlu0 %v130, 4
    %v1374 = vpop.permute.xlu0 %1373
    %1375 = vrot.lane.b32.xlu0 %v131, 4
    %v1376 = vpop.permute.xlu0 %1375
    %1377 = vrot.lane.b32.xlu0 %v132, 4
    %v1378 = vpop.permute.xlu0 %1377
    %1379 = vrot.lane.b32.xlu0 %v133, 4
    %v1380 = vpop.permute.xlu0 %1379
    %1381 = vrot.lane.b32.xlu0 %v134, 4
    %v1382 = vpop.permute.xlu0 %1381
    %1383 = vrot.lane.b32.xlu0 %v135, 4
    %v1384 = vpop.permute.xlu0 %1383
    %1385 = vrot.lane.b32.xlu0 %v136, 4
    %v1386 = vpop.permute.xlu0 %1385
    %1387 = vrot.lane.b32.xlu0 %v137, 4
    %v1388 = vpop.permute.xlu0 %1387
    %1389 = vrot.lane.b32.xlu0 %v138, 4
    %v1390 = vpop.permute.xlu0 %1389
    %1391 = vrot.lane.b32.xlu0 %v139, 4
    %v1392 = vpop.permute.xlu0 %1391
    %1393 = vrot.lane.b32.xlu0 %v140, 4
    %v1394 = vpop.permute.xlu0 %1393
    %v1411 = vsub.f32 %v125, %v1364
    %v1412 = vsub.f32 %v126, %v1366
    %v1413 = vsub.f32 %v127, %v1368
    %v1414 = vsub.f32 %v128, %v1370
    %v1415 = vsub.f32 %v129, %v1372
    %v1416 = vsub.f32 %v130, %v1374
    %v1417 = vsub.f32 %v131, %v1376
    %v1418 = vsub.f32 %v132, %v1378
    %v1419 = vsub.f32 %v133, %v1380
    %v1420 = vsub.f32 %v134, %v1382
    %v1421 = vsub.f32 %v135, %v1384
    %v1422 = vsub.f32 %v136, %v1386
    %v1423 = vsub.f32 %v137, %v1388
    %v1424 = vsub.f32 %v138, %v1390
    %v1425 = vsub.f32 %v139, %v1392
    %v1426 = vsub.f32 %v140, %v1394
    %v1427 = vand.u32 2147483647, %v1411
    %v1428 = vand.u32 2147483647, %v1412
    %v1429 = vand.u32 2147483647, %v1413
    %v1430 = vand.u32 2147483647, %v1414
    %v1431 = vand.u32 2147483647, %v1415
    %v1432 = vand.u32 2147483647, %v1416
    %v1433 = vand.u32 2147483647, %v1417
    %v1434 = vand.u32 2147483647, %v1418
    %v1435 = vand.u32 2147483647, %v1419
    %v1436 = vand.u32 2147483647, %v1420
    %v1437 = vand.u32 2147483647, %v1421
    %v1438 = vand.u32 2147483647, %v1422
    %v1439 = vand.u32 2147483647, %v1423
    %v1440 = vand.u32 2147483647, %v1424
    %v1441 = vand.u32 2147483647, %v1425
    %v1442 = vand.u32 2147483647, %v1426
    %1443 = vrot.lane.b32.xlu0 %v93, 4
    %v1444 = vpop.permute.xlu0 %1443
    %1445 = vrot.lane.b32.xlu0 %v94, 4
    %v1446 = vpop.permute.xlu0 %1445
    %1447 = vrot.lane.b32.xlu0 %v95, 4
    %v1448 = vpop.permute.xlu0 %1447
    %1449 = vrot.lane.b32.xlu0 %v96, 4
    %v1450 = vpop.permute.xlu0 %1449
    %1451 = vrot.lane.b32.xlu0 %v97, 4
    %v1452 = vpop.permute.xlu0 %1451
    %1453 = vrot.lane.b32.xlu0 %v98, 4
    %v1454 = vpop.permute.xlu0 %1453
    %1455 = vrot.lane.b32.xlu0 %v99, 4
    %v1456 = vpop.permute.xlu0 %1455
    %1457 = vrot.lane.b32.xlu0 %v100, 4
    %v1458 = vpop.permute.xlu0 %1457
    %1459 = vrot.lane.b32.xlu0 %v101, 4
    %v1460 = vpop.permute.xlu0 %1459
    %1461 = vrot.lane.b32.xlu0 %v102, 4
    %v1462 = vpop.permute.xlu0 %1461
    %1463 = vrot.lane.b32.xlu0 %v103, 4
    %v1464 = vpop.permute.xlu0 %1463
    %1465 = vrot.lane.b32.xlu0 %v104, 4
    %v1466 = vpop.permute.xlu0 %1465
    %1467 = vrot.lane.b32.xlu0 %v105, 4
    %v1468 = vpop.permute.xlu0 %1467
    %1469 = vrot.lane.b32.xlu0 %v106, 4
    %v1470 = vpop.permute.xlu0 %1469
    %1471 = vrot.lane.b32.xlu0 %v107, 4
    %v1472 = vpop.permute.xlu0 %1471
    %1473 = vrot.lane.b32.xlu0 %v108, 4
    %v1474 = vpop.permute.xlu0 %1473
    %v1491 = vmul.f32 %v93, %v1444
    %v1492 = vmul.f32 %v94, %v1446
    %v1493 = vmul.f32 %v95, %v1448
    %v1494 = vmul.f32 %v96, %v1450
    %v1495 = vmul.f32 %v97, %v1452
    %v1496 = vmul.f32 %v98, %v1454
    %v1497 = vmul.f32 %v99, %v1456
    %v1498 = vmul.f32 %v100, %v1458
    %v1499 = vmul.f32 %v101, %v1460
    %v1500 = vmul.f32 %v102, %v1462
    %v1501 = vmul.f32 %v103, %v1464
    %v1502 = vmul.f32 %v104, %v1466
    %v1503 = vmul.f32 %v105, %v1468
    %v1504 = vmul.f32 %v106, %v1470
    %v1505 = vmul.f32 %v107, %v1472
    %v1506 = vmul.f32 %v108, %v1474
    %v1507 = vmul.f32 %v1427, %v1491
    %v1508 = vmul.f32 %v1428, %v1492
    %v1509 = vmul.f32 %v1429, %v1493
    %v1510 = vmul.f32 %v1430, %v1494
    %v1511 = vmul.f32 %v1431, %v1495
    %v1512 = vmul.f32 %v1432, %v1496
    %v1513 = vmul.f32 %v1433, %v1497
    %v1514 = vmul.f32 %v1434, %v1498
    %v1515 = vmul.f32 %v1435, %v1499
    %v1516 = vmul.f32 %v1436, %v1500
    %v1517 = vmul.f32 %v1437, %v1501
    %v1518 = vmul.f32 %v1438, %v1502
    %v1519 = vmul.f32 %v1439, %v1503
    %v1520 = vmul.f32 %v1440, %v1504
    %v1521 = vmul.f32 %v1441, %v1505
    %v1522 = vmul.f32 %v1442, %v1506
    %1539 = vrot.lane.b32.xlu0 %v1507, 124
    %v1540 = vpop.permute.xlu0 %1539
    %1541 = vrot.lane.b32.xlu0 %v1508, 124
    %v1542 = vpop.permute.xlu0 %1541
    %1543 = vrot.lane.b32.xlu0 %v1509, 124
    %v1544 = vpop.permute.xlu0 %1543
    %1545 = vrot.lane.b32.xlu0 %v1510, 124
    %v1546 = vpop.permute.xlu0 %1545
    %1547 = vrot.lane.b32.xlu0 %v1511, 124
    %v1548 = vpop.permute.xlu0 %1547
    %1549 = vrot.lane.b32.xlu0 %v1512, 124
    %v1550 = vpop.permute.xlu0 %1549
    %1551 = vrot.lane.b32.xlu0 %v1513, 124
    %v1552 = vpop.permute.xlu0 %1551
    %1553 = vrot.lane.b32.xlu0 %v1514, 124
    %v1554 = vpop.permute.xlu0 %1553
    %1555 = vrot.lane.b32.xlu0 %v1515, 124
    %v1556 = vpop.permute.xlu0 %1555
    %1557 = vrot.lane.b32.xlu0 %v1516, 124
    %v1558 = vpop.permute.xlu0 %1557
    %1559 = vrot.lane.b32.xlu0 %v1517, 124
    %v1560 = vpop.permute.xlu0 %1559
    %1561 = vrot.lane.b32.xlu0 %v1518, 124
    %v1562 = vpop.permute.xlu0 %1561
    %1563 = vrot.lane.b32.xlu0 %v1519, 124
    %v1564 = vpop.permute.xlu0 %1563
    %1565 = vrot.lane.b32.xlu0 %v1520, 124
    %v1566 = vpop.permute.xlu0 %1565
    %1567 = vrot.lane.b32.xlu0 %v1521, 124
    %v1568 = vpop.permute.xlu0 %1567
    %1569 = vrot.lane.b32.xlu0 %v1522, 124
    %v1570 = vpop.permute.xlu0 %1569
    %v1587 = vsel %vm1361, %v1540, 0.0
    %v1588 = vsel %vm1362, %v1542, 0.0
    %v1589 = vsel %vm1361, %v1544, 0.0
    %v1590 = vsel %vm1362, %v1546, 0.0
    %v1591 = vsel %vm1361, %v1548, 0.0
    %v1592 = vsel %vm1362, %v1550, 0.0
    %v1593 = vsel %vm1361, %v1552, 0.0
    %v1594 = vsel %vm1362, %v1554, 0.0
    %v1595 = vsel %vm1361, %v1556, 0.0
    %v1596 = vsel %vm1362, %v1558, 0.0
    %v1597 = vsel %vm1361, %v1560, 0.0
    %v1598 = vsel %vm1362, %v1562, 0.0
    %v1599 = vsel %vm1361, %v1564, 0.0
    %v1600 = vsel %vm1362, %v1566, 0.0
    %v1601 = vsel %vm1361, %v1568, 0.0
    %v1602 = vsel %vm1362, %v1570, 0.0
    %vm1603 = vcmask 97280
    %v1604 = vsel %vm1603, %v1587, 0.0
    %v1605 = vsel %vm1603, %v1588, 0.0
    %v1606 = vadd.f32 %v1604, %v1605
    %v1607 = vsel %vm1603, %v1589, 0.0
    %v1608 = vadd.f32 %v1606, %v1607
    %v1609 = vsel %vm1603, %v1590, 0.0
    %v1610 = vadd.f32 %v1608, %v1609
    %v1611 = vsel %vm1603, %v1591, 0.0
    %v1612 = vadd.f32 %v1610, %v1611
    %v1613 = vsel %vm1603, %v1592, 0.0
    %v1614 = vadd.f32 %v1612, %v1613
    %v1615 = vsel %vm1603, %v1593, 0.0
    %v1616 = vadd.f32 %v1614, %v1615
    %v1617 = vsel %vm1603, %v1594, 0.0
    %v1618 = vadd.f32 %v1616, %v1617
    %v1619 = vsel %vm1603, %v1595, 0.0
    %v1620 = vadd.f32 %v1618, %v1619
    %v1621 = vsel %vm1603, %v1596, 0.0
    %v1622 = vadd.f32 %v1620, %v1621
    %v1623 = vsel %vm1603, %v1597, 0.0
    %v1624 = vadd.f32 %v1622, %v1623
    %v1625 = vsel %vm1603, %v1598, 0.0
    %v1626 = vadd.f32 %v1624, %v1625
    %v1627 = vsel %vm1603, %v1599, 0.0
    %v1628 = vadd.f32 %v1626, %v1627
    %v1629 = vsel %vm1603, %v1600, 0.0
    %v1630 = vadd.f32 %v1628, %v1629
    %v1631 = vsel %vm1603, %v1601, 0.0
    %v1632 = vadd.f32 %v1630, %v1631
    %v1633 = vsel %vm1603, %v1602, 0.0
    %v1634 = vadd.f32 %v1632, %v1633
    %1635 = vadd.xlane.f32.xlu0 %v1634
    %v1636 = vpop.xlane.xlu0 %1635
    %v1637 = vrot.slane %v1636, 4
    %v1638 = vadd.f32 %v1636, %v1637
    %v1639 = vrot.slane %v1638, 2
    %v1640 = vadd.f32 %v1638, %v1639
    %v1641 = vrot.slane %v1640, 1
    %v1642 = vadd.f32 %v1640, %v1641
    %s1643 = vtos %v1642
    %s1644 = sadd.f32 %s1643, 0.0
    %vm1645 = vcmask 1043456
    %v1646 = vrot.slane %v125, 4
    %v1647 = vrot.slane %v126, 4
    %v1648 = vsel %vm1645, %v1646, %v1647
    %v1649 = vrot.slane %v127, 4
    %v1650 = vrot.slane %v128, 4
    %v1651 = vsel %vm1645, %v1649, %v1650
    %v1652 = vrot.slane %v129, 4
    %v1653 = vrot.slane %v130, 4
    %v1654 = vsel %vm1645, %v1652, %v1653
    %v1655 = vrot.slane %v131, 4
    %v1656 = vrot.slane %v132, 4
    %v1657 = vsel %vm1645, %v1655, %v1656
    %v1658 = vrot.slane %v133, 4
    %v1659 = vrot.slane %v134, 4
    %v1660 = vsel %vm1645, %v1658, %v1659
    %v1661 = vrot.slane %v135, 4
    %v1662 = vrot.slane %v136, 4
    %v1663 = vsel %vm1645, %v1661, %v1662
    %v1664 = vrot.slane %v137, 4
    %v1665 = vrot.slane %v138, 4
    %v1666 = vsel %vm1645, %v1664, %v1665
    %v1667 = vrot.slane %v139, 4
    %v1668 = vrot.slane %v140, 4
    %v1669 = vsel %vm1645, %v1667, %v1668
    %v1686 = vsub.f32 %v125, %v1646
    %v1687 = vsub.f32 %v126, %v1648
    %v1688 = vsub.f32 %v127, %v1649
    %v1689 = vsub.f32 %v128, %v1651
    %v1690 = vsub.f32 %v129, %v1652
    %v1691 = vsub.f32 %v130, %v1654
    %v1692 = vsub.f32 %v131, %v1655
    %v1693 = vsub.f32 %v132, %v1657
    %v1694 = vsub.f32 %v133, %v1658
    %v1695 = vsub.f32 %v134, %v1660
    %v1696 = vsub.f32 %v135, %v1661
    %v1697 = vsub.f32 %v136, %v1663
    %v1698 = vsub.f32 %v137, %v1664
    %v1699 = vsub.f32 %v138, %v1666
    %v1700 = vsub.f32 %v139, %v1667
    %v1701 = vsub.f32 %v140, %v1669
    %v1702 = vand.u32 2147483647, %v1686
    %v1703 = vand.u32 2147483647, %v1687
    %v1704 = vand.u32 2147483647, %v1688
    %v1705 = vand.u32 2147483647, %v1689
    %v1706 = vand.u32 2147483647, %v1690
    %v1707 = vand.u32 2147483647, %v1691
    %v1708 = vand.u32 2147483647, %v1692
    %v1709 = vand.u32 2147483647, %v1693
    %v1710 = vand.u32 2147483647, %v1694
    %v1711 = vand.u32 2147483647, %v1695
    %v1712 = vand.u32 2147483647, %v1696
    %v1713 = vand.u32 2147483647, %v1697
    %v1714 = vand.u32 2147483647, %v1698
    %v1715 = vand.u32 2147483647, %v1699
    %v1716 = vand.u32 2147483647, %v1700
    %v1717 = vand.u32 2147483647, %v1701
    %v1718 = vrot.slane %v93, 4
    %v1719 = vrot.slane %v94, 4
    %v1720 = vsel %vm1645, %v1718, %v1719
    %v1721 = vrot.slane %v95, 4
    %v1722 = vrot.slane %v96, 4
    %v1723 = vsel %vm1645, %v1721, %v1722
    %v1724 = vrot.slane %v97, 4
    %v1725 = vrot.slane %v98, 4
    %v1726 = vsel %vm1645, %v1724, %v1725
    %v1727 = vrot.slane %v99, 4
    %v1728 = vrot.slane %v100, 4
    %v1729 = vsel %vm1645, %v1727, %v1728
    %v1730 = vrot.slane %v101, 4
    %v1731 = vrot.slane %v102, 4
    %v1732 = vsel %vm1645, %v1730, %v1731
    %v1733 = vrot.slane %v103, 4
    %v1734 = vrot.slane %v104, 4
    %v1735 = vsel %vm1645, %v1733, %v1734
    %v1736 = vrot.slane %v105, 4
    %v1737 = vrot.slane %v106, 4
    %v1738 = vsel %vm1645, %v1736, %v1737
    %v1739 = vrot.slane %v107, 4
    %v1740 = vrot.slane %v108, 4
    %v1741 = vsel %vm1645, %v1739, %v1740
    %v1758 = vmul.f32 %v93, %v1718
    %v1759 = vmul.f32 %v94, %v1720
    %v1760 = vmul.f32 %v95, %v1721
    %v1761 = vmul.f32 %v96, %v1723
    %v1762 = vmul.f32 %v97, %v1724
    %v1763 = vmul.f32 %v98, %v1726
    %v1764 = vmul.f32 %v99, %v1727
    %v1765 = vmul.f32 %v100, %v1729
    %v1766 = vmul.f32 %v101, %v1730
    %v1767 = vmul.f32 %v102, %v1732
    %v1768 = vmul.f32 %v103, %v1733
    %v1769 = vmul.f32 %v104, %v1735
    %v1770 = vmul.f32 %v105, %v1736
    %v1771 = vmul.f32 %v106, %v1738
    %v1772 = vmul.f32 %v107, %v1739
    %v1773 = vmul.f32 %v108, %v1741
    %v1774 = vmul.f32 %v1702, %v1758
    %v1775 = vmul.f32 %v1703, %v1759
    %v1776 = vmul.f32 %v1704, %v1760
    %v1777 = vmul.f32 %v1705, %v1761
    %v1778 = vmul.f32 %v1706, %v1762
    %v1779 = vmul.f32 %v1707, %v1763
    %v1780 = vmul.f32 %v1708, %v1764
    %v1781 = vmul.f32 %v1709, %v1765
    %v1782 = vmul.f32 %v1710, %v1766
    %v1783 = vmul.f32 %v1711, %v1767
    %v1784 = vmul.f32 %v1712, %v1768
    %v1785 = vmul.f32 %v1713, %v1769
    %v1786 = vmul.f32 %v1714, %v1770
    %v1787 = vmul.f32 %v1715, %v1771
    %v1788 = vmul.f32 %v1716, %v1772
    %v1789 = vmul.f32 %v1717, %v1773
    %v1806 = vrot.slane %v1774, 4
    %v1807 = vrot.slane %v1775, 4
    %v1808 = vsel %vm1645, %v1806, %v1807
    %v1809 = vrot.slane %v1776, 4
    %v1810 = vrot.slane %v1777, 4
    %v1811 = vsel %vm1645, %v1809, %v1810
    %v1812 = vrot.slane %v1778, 4
    %v1813 = vrot.slane %v1779, 4
    %v1814 = vsel %vm1645, %v1812, %v1813
    %v1815 = vrot.slane %v1780, 4
    %v1816 = vrot.slane %v1781, 4
    %v1817 = vsel %vm1645, %v1815, %v1816
    %v1818 = vrot.slane %v1782, 4
    %v1819 = vrot.slane %v1783, 4
    %v1820 = vsel %vm1645, %v1818, %v1819
    %v1821 = vrot.slane %v1784, 4
    %v1822 = vrot.slane %v1785, 4
    %v1823 = vsel %vm1645, %v1821, %v1822
    %v1824 = vrot.slane %v1786, 4
    %v1825 = vrot.slane %v1787, 4
    %v1826 = vsel %vm1645, %v1824, %v1825
    %v1827 = vrot.slane %v1788, 4
    %v1828 = vrot.slane %v1789, 4
    %v1829 = vsel %vm1645, %v1827, %v1828
    %v1846 = vsel %vm1361, %v1808, 0.0
    %v1847 = vsel %vm1362, %v1807, 0.0
    %v1848 = vsel %vm1361, %v1811, 0.0
    %v1849 = vsel %vm1362, %v1810, 0.0
    %v1850 = vsel %vm1361, %v1814, 0.0
    %v1851 = vsel %vm1362, %v1813, 0.0
    %v1852 = vsel %vm1361, %v1817, 0.0
    %v1853 = vsel %vm1362, %v1816, 0.0
    %v1854 = vsel %vm1361, %v1820, 0.0
    %v1855 = vsel %vm1362, %v1819, 0.0
    %v1856 = vsel %vm1361, %v1823, 0.0
    %v1857 = vsel %vm1362, %v1822, 0.0
    %v1858 = vsel %vm1361, %v1826, 0.0
    %v1859 = vsel %vm1362, %v1825, 0.0
    %v1860 = vsel %vm1361, %v1829, 0.0
    %v1861 = vsel %vm1362, %v1828, 0.0
    %v1862 = vsel %vm646, %v1846, 0.0
    %vm1863 = vcmask 125952
    %v1864 = vsel %vm1863, %v1847, 0.0
    %v1865 = vadd.f32 %v1862, %v1864
    %v1866 = vsel %vm646, %v1848, 0.0
    %v1867 = vadd.f32 %v1865, %v1866
    %v1868 = vsel %vm1863, %v1849, 0.0
    %v1869 = vadd.f32 %v1867, %v1868
    %v1870 = vsel %vm646, %v1850, 0.0
    %v1871 = vadd.f32 %v1869, %v1870
    %v1872 = vsel %vm1863, %v1851, 0.0
    %v1873 = vadd.f32 %v1871, %v1872
    %v1874 = vsel %vm646, %v1852, 0.0
    %v1875 = vadd.f32 %v1873, %v1874
    %v1876 = vsel %vm1863, %v1853, 0.0
    %v1877 = vadd.f32 %v1875, %v1876
    %v1878 = vsel %vm646, %v1854, 0.0
    %v1879 = vadd.f32 %v1877, %v1878
    %v1880 = vsel %vm1863, %v1855, 0.0
    %v1881 = vadd.f32 %v1879, %v1880
    %v1882 = vsel %vm646, %v1856, 0.0
    %v1883 = vadd.f32 %v1881, %v1882
    %v1884 = vsel %vm1863, %v1857, 0.0
    %v1885 = vadd.f32 %v1883, %v1884
    %v1886 = vsel %vm646, %v1858, 0.0
    %v1887 = vadd.f32 %v1885, %v1886
    %v1888 = vsel %vm1863, %v1859, 0.0
    %v1889 = vadd.f32 %v1887, %v1888
    %v1890 = vsel %vm646, %v1860, 0.0
    %v1891 = vadd.f32 %v1889, %v1890
    %v1892 = vsel %vm1863, %v1861, 0.0
    %v1893 = vadd.f32 %v1891, %v1892
    %1894 = vadd.xlane.f32.xlu0 %v1893
    %v1895 = vpop.xlane.xlu0 %1894
    %v1896 = vrot.slane %v1895, 4
    %v1897 = vadd.f32 %v1895, %v1896
    %v1898 = vrot.slane %v1897, 2
    %v1899 = vadd.f32 %v1897, %v1898
    %v1900 = vrot.slane %v1899, 1
    %v1901 = vadd.f32 %v1899, %v1900
    %s1902 = vtos %v1901
    %s1903 = sadd.f32 %s1644, %s1902
    %v1904 = vsel %vm1361, %v93, 0.0
    %v1905 = vsel %vm1362, %v94, 0.0
    %v1906 = vsel %vm1361, %v95, 0.0
    %v1907 = vsel %vm1362, %v96, 0.0
    %v1908 = vsel %vm1361, %v97, 0.0
    %v1909 = vsel %vm1362, %v98, 0.0
    %v1910 = vsel %vm1361, %v99, 0.0
    %v1911 = vsel %vm1362, %v100, 0.0
    %v1912 = vsel %vm1361, %v101, 0.0
    %v1913 = vsel %vm1362, %v102, 0.0
    %v1914 = vsel %vm1361, %v103, 0.0
    %v1915 = vsel %vm1362, %v104, 0.0
    %v1916 = vsel %vm1361, %v105, 0.0
    %v1917 = vsel %vm1362, %v106, 0.0
    %v1918 = vsel %vm1361, %v107, 0.0
    %v1919 = vsel %vm1362, %v108, 0.0
    %v1920 = vsel %vm646, %v1904, 0.0
    %v1921 = vsel %vm646, %v1905, 0.0
    %v1922 = vadd.f32 %v1920, %v1921
    %v1923 = vsel %vm646, %v1906, 0.0
    %v1924 = vadd.f32 %v1922, %v1923
    %v1925 = vsel %vm646, %v1907, 0.0
    %v1926 = vadd.f32 %v1924, %v1925
    %v1927 = vsel %vm646, %v1908, 0.0
    %v1928 = vadd.f32 %v1926, %v1927
    %v1929 = vsel %vm646, %v1909, 0.0
    %v1930 = vadd.f32 %v1928, %v1929
    %v1931 = vsel %vm646, %v1910, 0.0
    %v1932 = vadd.f32 %v1930, %v1931
    %v1933 = vsel %vm646, %v1911, 0.0
    %v1934 = vadd.f32 %v1932, %v1933
    %v1935 = vsel %vm646, %v1912, 0.0
    %v1936 = vadd.f32 %v1934, %v1935
    %v1937 = vsel %vm646, %v1913, 0.0
    %v1938 = vadd.f32 %v1936, %v1937
    %v1939 = vsel %vm646, %v1914, 0.0
    %v1940 = vadd.f32 %v1938, %v1939
    %v1941 = vsel %vm646, %v1915, 0.0
    %v1942 = vadd.f32 %v1940, %v1941
    %v1943 = vsel %vm646, %v1916, 0.0
    %v1944 = vadd.f32 %v1942, %v1943
    %v1945 = vsel %vm646, %v1917, 0.0
    %v1946 = vadd.f32 %v1944, %v1945
    %v1947 = vsel %vm646, %v1918, 0.0
    %v1948 = vadd.f32 %v1946, %v1947
    %v1949 = vsel %vm646, %v1919, 0.0
    %v1950 = vadd.f32 %v1948, %v1949
    %1951 = vadd.xlane.f32.xlu0 %v1950
    %v1952 = vpop.xlane.xlu0 %1951
    %v1953 = vrot.slane %v1952, 4
    %v1954 = vadd.f32 %v1952, %v1953
    %v1955 = vrot.slane %v1954, 2
    %v1956 = vadd.f32 %v1954, %v1955
    %v1957 = vrot.slane %v1956, 1
    %v1958 = vadd.f32 %v1956, %v1957
    %s1959 = vtos %v1958
    %vm1960 = vcmp.eq.s32.totalorder %v145, 2
    %vm1961 = vmand %vm729, %vm1960
    %v1962 = vstv %s1903
    %v1963 = vsel %vm1961, %v1962, 0.0
    %v1964 = vadd.f32 %v1354, %v1963
    %vm1965 = vmand %vm735, %vm1960
    %v1966 = vstv %s1959
    %v1967 = vsel %vm1965, %v1966, 0.0
    %v1968 = vadd.f32 %v1964, %v1967
    %v1969 = vand.u32 %v142, 7
    %v1970 = vand.u32 %v143, 7
    %vm1971 = vcmp.eq.s32.totalorder %v1969, 0
    %vm1972 = vcmp.eq.s32.totalorder %v1970, 0
    %v1973 = vand.u32 %v145, 7
    %vm1974 = vcmp.eq.s32.totalorder %v1973, 0
    %vm1975 = vmand %vm1971, %vm1974
    %vm1976 = vmand %vm1972, %vm1974
    %1977 = vrot.lane.b32.xlu0 %v125, 8
    %v1978 = vpop.permute.xlu0 %1977
    %1979 = vrot.lane.b32.xlu0 %v126, 8
    %v1980 = vpop.permute.xlu0 %1979
    %1981 = vrot.lane.b32.xlu0 %v127, 8
    %v1982 = vpop.permute.xlu0 %1981
    %1983 = vrot.lane.b32.xlu0 %v128, 8
    %v1984 = vpop.permute.xlu0 %1983
    %1985 = vrot.lane.b32.xlu0 %v129, 8
    %v1986 = vpop.permute.xlu0 %1985
    %1987 = vrot.lane.b32.xlu0 %v130, 8
    %v1988 = vpop.permute.xlu0 %1987
    %1989 = vrot.lane.b32.xlu0 %v131, 8
    %v1990 = vpop.permute.xlu0 %1989
    %1991 = vrot.lane.b32.xlu0 %v132, 8
    %v1992 = vpop.permute.xlu0 %1991
    %1993 = vrot.lane.b32.xlu0 %v133, 8
    %v1994 = vpop.permute.xlu0 %1993
    %1995 = vrot.lane.b32.xlu0 %v134, 8
    %v1996 = vpop.permute.xlu0 %1995
    %1997 = vrot.lane.b32.xlu0 %v135, 8
    %v1998 = vpop.permute.xlu0 %1997
    %1999 = vrot.lane.b32.xlu0 %v136, 8
    %v2000 = vpop.permute.xlu0 %1999
    %2001 = vrot.lane.b32.xlu0 %v137, 8
    %v2002 = vpop.permute.xlu0 %2001
    %2003 = vrot.lane.b32.xlu0 %v138, 8
    %v2004 = vpop.permute.xlu0 %2003
    %2005 = vrot.lane.b32.xlu0 %v139, 8
    %v2006 = vpop.permute.xlu0 %2005
    %2007 = vrot.lane.b32.xlu0 %v140, 8
    %v2008 = vpop.permute.xlu0 %2007
    %v2025 = vsub.f32 %v125, %v1978
    %v2026 = vsub.f32 %v126, %v1980
    %v2027 = vsub.f32 %v127, %v1982
    %v2028 = vsub.f32 %v128, %v1984
    %v2029 = vsub.f32 %v129, %v1986
    %v2030 = vsub.f32 %v130, %v1988
    %v2031 = vsub.f32 %v131, %v1990
    %v2032 = vsub.f32 %v132, %v1992
    %v2033 = vsub.f32 %v133, %v1994
    %v2034 = vsub.f32 %v134, %v1996
    %v2035 = vsub.f32 %v135, %v1998
    %v2036 = vsub.f32 %v136, %v2000
    %v2037 = vsub.f32 %v137, %v2002
    %v2038 = vsub.f32 %v138, %v2004
    %v2039 = vsub.f32 %v139, %v2006
    %v2040 = vsub.f32 %v140, %v2008
    %v2041 = vand.u32 2147483647, %v2025
    %v2042 = vand.u32 2147483647, %v2026
    %v2043 = vand.u32 2147483647, %v2027
    %v2044 = vand.u32 2147483647, %v2028
    %v2045 = vand.u32 2147483647, %v2029
    %v2046 = vand.u32 2147483647, %v2030
    %v2047 = vand.u32 2147483647, %v2031
    %v2048 = vand.u32 2147483647, %v2032
    %v2049 = vand.u32 2147483647, %v2033
    %v2050 = vand.u32 2147483647, %v2034
    %v2051 = vand.u32 2147483647, %v2035
    %v2052 = vand.u32 2147483647, %v2036
    %v2053 = vand.u32 2147483647, %v2037
    %v2054 = vand.u32 2147483647, %v2038
    %v2055 = vand.u32 2147483647, %v2039
    %v2056 = vand.u32 2147483647, %v2040
    %2057 = vrot.lane.b32.xlu0 %v93, 8
    %v2058 = vpop.permute.xlu0 %2057
    %2059 = vrot.lane.b32.xlu0 %v94, 8
    %v2060 = vpop.permute.xlu0 %2059
    %2061 = vrot.lane.b32.xlu0 %v95, 8
    %v2062 = vpop.permute.xlu0 %2061
    %2063 = vrot.lane.b32.xlu0 %v96, 8
    %v2064 = vpop.permute.xlu0 %2063
    %2065 = vrot.lane.b32.xlu0 %v97, 8
    %v2066 = vpop.permute.xlu0 %2065
    %2067 = vrot.lane.b32.xlu0 %v98, 8
    %v2068 = vpop.permute.xlu0 %2067
    %2069 = vrot.lane.b32.xlu0 %v99, 8
    %v2070 = vpop.permute.xlu0 %2069
    %2071 = vrot.lane.b32.xlu0 %v100, 8
    %v2072 = vpop.permute.xlu0 %2071
    %2073 = vrot.lane.b32.xlu0 %v101, 8
    %v2074 = vpop.permute.xlu0 %2073
    %2075 = vrot.lane.b32.xlu0 %v102, 8
    %v2076 = vpop.permute.xlu0 %2075
    %2077 = vrot.lane.b32.xlu0 %v103, 8
    %v2078 = vpop.permute.xlu0 %2077
    %2079 = vrot.lane.b32.xlu0 %v104, 8
    %v2080 = vpop.permute.xlu0 %2079
    %2081 = vrot.lane.b32.xlu0 %v105, 8
    %v2082 = vpop.permute.xlu0 %2081
    %2083 = vrot.lane.b32.xlu0 %v106, 8
    %v2084 = vpop.permute.xlu0 %2083
    %2085 = vrot.lane.b32.xlu0 %v107, 8
    %v2086 = vpop.permute.xlu0 %2085
    %2087 = vrot.lane.b32.xlu0 %v108, 8
    %v2088 = vpop.permute.xlu0 %2087
    %v2105 = vmul.f32 %v93, %v2058
    %v2106 = vmul.f32 %v94, %v2060
    %v2107 = vmul.f32 %v95, %v2062
    %v2108 = vmul.f32 %v96, %v2064
    %v2109 = vmul.f32 %v97, %v2066
    %v2110 = vmul.f32 %v98, %v2068
    %v2111 = vmul.f32 %v99, %v2070
    %v2112 = vmul.f32 %v100, %v2072
    %v2113 = vmul.f32 %v101, %v2074
    %v2114 = vmul.f32 %v102, %v2076
    %v2115 = vmul.f32 %v103, %v2078
    %v2116 = vmul.f32 %v104, %v2080
    %v2117 = vmul.f32 %v105, %v2082
    %v2118 = vmul.f32 %v106, %v2084
    %v2119 = vmul.f32 %v107, %v2086
    %v2120 = vmul.f32 %v108, %v2088
    %v2121 = vmul.f32 %v2041, %v2105
    %v2122 = vmul.f32 %v2042, %v2106
    %v2123 = vmul.f32 %v2043, %v2107
    %v2124 = vmul.f32 %v2044, %v2108
    %v2125 = vmul.f32 %v2045, %v2109
    %v2126 = vmul.f32 %v2046, %v2110
    %v2127 = vmul.f32 %v2047, %v2111
    %v2128 = vmul.f32 %v2048, %v2112
    %v2129 = vmul.f32 %v2049, %v2113
    %v2130 = vmul.f32 %v2050, %v2114
    %v2131 = vmul.f32 %v2051, %v2115
    %v2132 = vmul.f32 %v2052, %v2116
    %v2133 = vmul.f32 %v2053, %v2117
    %v2134 = vmul.f32 %v2054, %v2118
    %v2135 = vmul.f32 %v2055, %v2119
    %v2136 = vmul.f32 %v2056, %v2120
    %2153 = vrot.lane.b32.xlu0 %v2121, 120
    %v2154 = vpop.permute.xlu0 %2153
    %2155 = vrot.lane.b32.xlu0 %v2122, 120
    %v2156 = vpop.permute.xlu0 %2155
    %2157 = vrot.lane.b32.xlu0 %v2123, 120
    %v2158 = vpop.permute.xlu0 %2157
    %2159 = vrot.lane.b32.xlu0 %v2124, 120
    %v2160 = vpop.permute.xlu0 %2159
    %2161 = vrot.lane.b32.xlu0 %v2125, 120
    %v2162 = vpop.permute.xlu0 %2161
    %2163 = vrot.lane.b32.xlu0 %v2126, 120
    %v2164 = vpop.permute.xlu0 %2163
    %2165 = vrot.lane.b32.xlu0 %v2127, 120
    %v2166 = vpop.permute.xlu0 %2165
    %2167 = vrot.lane.b32.xlu0 %v2128, 120
    %v2168 = vpop.permute.xlu0 %2167
    %2169 = vrot.lane.b32.xlu0 %v2129, 120
    %v2170 = vpop.permute.xlu0 %2169
    %2171 = vrot.lane.b32.xlu0 %v2130, 120
    %v2172 = vpop.permute.xlu0 %2171
    %2173 = vrot.lane.b32.xlu0 %v2131, 120
    %v2174 = vpop.permute.xlu0 %2173
    %2175 = vrot.lane.b32.xlu0 %v2132, 120
    %v2176 = vpop.permute.xlu0 %2175
    %2177 = vrot.lane.b32.xlu0 %v2133, 120
    %v2178 = vpop.permute.xlu0 %2177
    %2179 = vrot.lane.b32.xlu0 %v2134, 120
    %v2180 = vpop.permute.xlu0 %2179
    %2181 = vrot.lane.b32.xlu0 %v2135, 120
    %v2182 = vpop.permute.xlu0 %2181
    %2183 = vrot.lane.b32.xlu0 %v2136, 120
    %v2184 = vpop.permute.xlu0 %2183
    %v2201 = vsel %vm1975, %v2154, 0.0
    %v2202 = vsel %vm1976, %v2156, 0.0
    %v2203 = vsel %vm1975, %v2158, 0.0
    %v2204 = vsel %vm1976, %v2160, 0.0
    %v2205 = vsel %vm1975, %v2162, 0.0
    %v2206 = vsel %vm1976, %v2164, 0.0
    %v2207 = vsel %vm1975, %v2166, 0.0
    %v2208 = vsel %vm1976, %v2168, 0.0
    %v2209 = vsel %vm1975, %v2170, 0.0
    %v2210 = vsel %vm1976, %v2172, 0.0
    %v2211 = vsel %vm1975, %v2174, 0.0
    %v2212 = vsel %vm1976, %v2176, 0.0
    %v2213 = vsel %vm1975, %v2178, 0.0
    %v2214 = vsel %vm1976, %v2180, 0.0
    %v2215 = vsel %vm1975, %v2182, 0.0
    %v2216 = vsel %vm1976, %v2184, 0.0
    %vm2217 = vcmask 64512
    %v2218 = vsel %vm2217, %v2201, 0.0
    %v2219 = vsel %vm2217, %v2202, 0.0
    %v2220 = vadd.f32 %v2218, %v2219
    %v2221 = vsel %vm2217, %v2203, 0.0
    %v2222 = vadd.f32 %v2220, %v2221
    %v2223 = vsel %vm2217, %v2204, 0.0
    %v2224 = vadd.f32 %v2222, %v2223
    %v2225 = vsel %vm2217, %v2205, 0.0
    %v2226 = vadd.f32 %v2224, %v2225
    %v2227 = vsel %vm2217, %v2206, 0.0
    %v2228 = vadd.f32 %v2226, %v2227
    %v2229 = vsel %vm2217, %v2207, 0.0
    %v2230 = vadd.f32 %v2228, %v2229
    %v2231 = vsel %vm2217, %v2208, 0.0
    %v2232 = vadd.f32 %v2230, %v2231
    %v2233 = vsel %vm2217, %v2209, 0.0
    %v2234 = vadd.f32 %v2232, %v2233
    %v2235 = vsel %vm2217, %v2210, 0.0
    %v2236 = vadd.f32 %v2234, %v2235
    %v2237 = vsel %vm2217, %v2211, 0.0
    %v2238 = vadd.f32 %v2236, %v2237
    %v2239 = vsel %vm2217, %v2212, 0.0
    %v2240 = vadd.f32 %v2238, %v2239
    %v2241 = vsel %vm2217, %v2213, 0.0
    %v2242 = vadd.f32 %v2240, %v2241
    %v2243 = vsel %vm2217, %v2214, 0.0
    %v2244 = vadd.f32 %v2242, %v2243
    %v2245 = vsel %vm2217, %v2215, 0.0
    %v2246 = vadd.f32 %v2244, %v2245
    %v2247 = vsel %vm2217, %v2216, 0.0
    %v2248 = vadd.f32 %v2246, %v2247
    %2249 = vadd.xlane.f32.xlu0 %v2248
    %v2250 = vpop.xlane.xlu0 %2249
    %v2251 = vrot.slane %v2250, 4
    %v2252 = vadd.f32 %v2250, %v2251
    %v2253 = vrot.slane %v2252, 2
    %v2254 = vadd.f32 %v2252, %v2253
    %v2255 = vrot.slane %v2254, 1
    %v2256 = vadd.f32 %v2254, %v2255
    %s2257 = vtos %v2256
    %s2258 = sadd.f32 %s2257, 0.0
    %v2259 = vsub.f32 %v126, %v125
    %v2260 = vsub.f32 %v128, %v127
    %v2261 = vsub.f32 %v130, %v129
    %v2262 = vsub.f32 %v132, %v131
    %v2263 = vsub.f32 %v134, %v133
    %v2264 = vsub.f32 %v136, %v135
    %v2265 = vsub.f32 %v138, %v137
    %v2266 = vsub.f32 %v140, %v139
    %v2267 = vand.u32 2147483647, %v2259
    %v2268 = vand.u32 2147483647, %v2260
    %v2269 = vand.u32 2147483647, %v2261
    %v2270 = vand.u32 2147483647, %v2262
    %v2271 = vand.u32 2147483647, %v2263
    %v2272 = vand.u32 2147483647, %v2264
    %v2273 = vand.u32 2147483647, %v2265
    %v2274 = vand.u32 2147483647, %v2266
    %v2275 = vmul.f32 %v94, %v93
    %v2276 = vmul.f32 %v96, %v95
    %v2277 = vmul.f32 %v98, %v97
    %v2278 = vmul.f32 %v100, %v99
    %v2279 = vmul.f32 %v102, %v101
    %v2280 = vmul.f32 %v104, %v103
    %v2281 = vmul.f32 %v106, %v105
    %v2282 = vmul.f32 %v108, %v107
    %v2283 = vmul.f32 %v2267, %v2275
    %v2284 = vmul.f32 %v2268, %v2276
    %v2285 = vmul.f32 %v2269, %v2277
    %v2286 = vmul.f32 %v2270, %v2278
    %v2287 = vmul.f32 %v2271, %v2279
    %v2288 = vmul.f32 %v2272, %v2280
    %v2289 = vmul.f32 %v2273, %v2281
    %v2290 = vmul.f32 %v2274, %v2282
    %v2291 = vsel %vm1975, %v2283, 0.0
    %v2292 = vsel %vm1975, %v2284, 0.0
    %v2293 = vsel %vm1975, %v2285, 0.0
    %v2294 = vsel %vm1975, %v2286, 0.0
    %v2295 = vsel %vm1975, %v2287, 0.0
    %v2296 = vsel %vm1975, %v2288, 0.0
    %v2297 = vsel %vm1975, %v2289, 0.0
    %v2298 = vsel %vm1975, %v2290, 0.0
    %v2299 = vsel %vm646, %v2291, 0.0
    %v2300 = vsel %vm646, %v2292, 0.0
    %v2301 = vadd.f32 %v2299, %v2300
    %v2302 = vsel %vm646, %v2293, 0.0
    %v2303 = vadd.f32 %v2301, %v2302
    %v2304 = vsel %vm646, %v2294, 0.0
    %v2305 = vadd.f32 %v2303, %v2304
    %v2306 = vsel %vm646, %v2295, 0.0
    %v2307 = vadd.f32 %v2305, %v2306
    %v2308 = vsel %vm646, %v2296, 0.0
    %v2309 = vadd.f32 %v2307, %v2308
    %v2310 = vsel %vm646, %v2297, 0.0
    %v2311 = vadd.f32 %v2309, %v2310
    %v2312 = vsel %vm646, %v2298, 0.0
    %v2313 = vadd.f32 %v2311, %v2312
    %2314 = vadd.xlane.f32.xlu0 %v2313
    %v2315 = vpop.xlane.xlu0 %2314
    %v2316 = vrot.slane %v2315, 4
    %v2317 = vadd.f32 %v2315, %v2316
    %v2318 = vrot.slane %v2317, 2
    %v2319 = vadd.f32 %v2317, %v2318
    %v2320 = vrot.slane %v2319, 1
    %v2321 = vadd.f32 %v2319, %v2320
    %s2322 = vtos %v2321
    %s2323 = sadd.f32 %s2258, %s2322
    %v2324 = vsel %vm1975, %v93, 0.0
    %v2325 = vsel %vm1976, %v94, 0.0
    %v2326 = vsel %vm1975, %v95, 0.0
    %v2327 = vsel %vm1976, %v96, 0.0
    %v2328 = vsel %vm1975, %v97, 0.0
    %v2329 = vsel %vm1976, %v98, 0.0
    %v2330 = vsel %vm1975, %v99, 0.0
    %v2331 = vsel %vm1976, %v100, 0.0
    %v2332 = vsel %vm1975, %v101, 0.0
    %v2333 = vsel %vm1976, %v102, 0.0
    %v2334 = vsel %vm1975, %v103, 0.0
    %v2335 = vsel %vm1976, %v104, 0.0
    %v2336 = vsel %vm1975, %v105, 0.0
    %v2337 = vsel %vm1976, %v106, 0.0
    %v2338 = vsel %vm1975, %v107, 0.0
    %v2339 = vsel %vm1976, %v108, 0.0
    %v2340 = vsel %vm646, %v2324, 0.0
    %v2341 = vsel %vm646, %v2325, 0.0
    %v2342 = vadd.f32 %v2340, %v2341
    %v2343 = vsel %vm646, %v2326, 0.0
    %v2344 = vadd.f32 %v2342, %v2343
    %v2345 = vsel %vm646, %v2327, 0.0
    %v2346 = vadd.f32 %v2344, %v2345
    %v2347 = vsel %vm646, %v2328, 0.0
    %v2348 = vadd.f32 %v2346, %v2347
    %v2349 = vsel %vm646, %v2329, 0.0
    %v2350 = vadd.f32 %v2348, %v2349
    %v2351 = vsel %vm646, %v2330, 0.0
    %v2352 = vadd.f32 %v2350, %v2351
    %v2353 = vsel %vm646, %v2331, 0.0
    %v2354 = vadd.f32 %v2352, %v2353
    %v2355 = vsel %vm646, %v2332, 0.0
    %v2356 = vadd.f32 %v2354, %v2355
    %v2357 = vsel %vm646, %v2333, 0.0
    %v2358 = vadd.f32 %v2356, %v2357
    %v2359 = vsel %vm646, %v2334, 0.0
    %v2360 = vadd.f32 %v2358, %v2359
    %v2361 = vsel %vm646, %v2335, 0.0
    %v2362 = vadd.f32 %v2360, %v2361
    %v2363 = vsel %vm646, %v2336, 0.0
    %v2364 = vadd.f32 %v2362, %v2363
    %v2365 = vsel %vm646, %v2337, 0.0
    %v2366 = vadd.f32 %v2364, %v2365
    %v2367 = vsel %vm646, %v2338, 0.0
    %v2368 = vadd.f32 %v2366, %v2367
    %v2369 = vsel %vm646, %v2339, 0.0
    %v2370 = vadd.f32 %v2368, %v2369
    %2371 = vadd.xlane.f32.xlu0 %v2370
    %v2372 = vpop.xlane.xlu0 %2371
    %v2373 = vrot.slane %v2372, 4
    %v2374 = vadd.f32 %v2372, %v2373
    %v2375 = vrot.slane %v2374, 2
    %v2376 = vadd.f32 %v2374, %v2375
    %v2377 = vrot.slane %v2376, 1
    %v2378 = vadd.f32 %v2376, %v2377
    %s2379 = vtos %v2378
    %vm2380 = vcmp.eq.s32.totalorder %v145, 3
    %vm2381 = vmand %vm729, %vm2380
    %v2382 = vstv %s2323
    %v2383 = vsel %vm2381, %v2382, 0.0
    %v2384 = vadd.f32 %v1968, %v2383
    %vm2385 = vmand %vm735, %vm2380
    %v2386 = vstv %s2379
    %v2387 = vsel %vm2385, %v2386, 0.0
    %v2388 = vadd.f32 %v2384, %v2387
    %2389 = vst [vmem:[%s3] sm:$0xff] %v2388
    // Predicated region
    $region26: #{gradient_loss_forward.1} parent=1 // pred_check
      _
    $region27: #{gradient_loss_forward.1} parent=1 // pred_check_branch
      %2391 = sbr.rel (0) target = $region29
    $region28: #{gradient_loss_forward.1} parent=1 // pred_region
      _
    $region29: #{gradient_loss_forward.1} parent=1 // pred_fallthru
      _
    // Predicated region
    $region30: #{gradient_loss_forward.1} parent=1 // pred_check
      _
    $region31: #{gradient_loss_forward.1} parent=1 // pred_check_branch
      %2393 = sbr.rel (0) target = $region33
    $region32: #{gradient_loss_forward.1} parent=1 // pred_region
      _
    $region33: #{gradient_loss_forward.1} parent=1 // pred_fallthru
      _
    %2394 = vsyncpa [#allocation3], 1
    %2395 = vsyncpa [#allocation5], 1

</llo_original>
